<compile_context>
chip_gen: v7x
topology: tpu7x:2x2x1
jax: 0.10.0
libtpu: 0.0.40
codegen_flags: <defaults>
</compile_context>

<pallas_src>
import jax
import jax.numpy as jnp
from jax.experimental import pallas as pl
from jax.experimental.pallas import tpu as pltpu

_VMEM_LIMIT = 32 * 1024 * 1024


# --------------------------------------------------------------------------
# Helpers
# --------------------------------------------------------------------------

def _largest_divisor_leq(n, cap):
    for d in range(min(cap, n), 0, -1):
        if n % d == 0:
            return d
    return 1


def _pick_bn(N, HoWo, cap=8):
    """Largest batch chunk for the predictor kernel with 128-aligned lane blocks."""
    best = None
    for d in range(1, N + 1):
        if N % d:
            continue
        if d <= cap and (d == N or (d * HoWo) % 128 == 0):
            best = d
    return N if best is None else best


def identity_grid(grid_size, ulim=(-1.0, 1.0), vlim=(-1.0, 1.0)):
    """Identity sampling grid [H, W, 2]; (..., 0)=u (x), (..., 1)=v (y)."""
    H, W = grid_size
    us = jnp.linspace(ulim[0], ulim[1], W, dtype=jnp.float32)
    vs = jnp.linspace(vlim[0], vlim[1], H, dtype=jnp.float32)
    vv, uu = jnp.meshgrid(vs, us, indexing="ij")
    return jnp.stack([uu, vv], axis=-1)


def bilinear_1d_matrix(coords, size_in, align_corners=False):
    """1-D bilinear interpolation matrix [n_out, size_in] (padding_mode='zeros')."""
    c = coords.astype(jnp.float32)
    if align_corners:
        pix = (c + 1.0) * 0.5 * (size_in - 1)
    else:
        pix = ((c + 1.0) * size_in - 1.0) * 0.5
    i0 = jnp.floor(pix)
    i1 = i0 + 1.0
    w_hi = pix - i0
    w_lo = 1.0 - w_hi

    def tap(i, w):
        valid = (i >= 0) & (i <= size_in - 1)
        idx = jnp.clip(i, 0, size_in - 1).astype(jnp.int32)
        return jax.nn.one_hot(idx, size_in, dtype=jnp.float32) * (w * valid)[:, None]

    return tap(i0, w_lo) + tap(i1, w_hi)


def conv3_shift_stack(M, n_out):
    """Stack of row-shifted copies of M (shifts -1, 0, +1, zero rows at the borders).

    Folds one spatial axis of the 3x3 conv (padding=1) into the sampling operator.
    M: [n_out, n_in] -> [3*n_out, n_in].
    """
    blocks = []
    for d in (-1, 0, 1):
        idx = jnp.arange(n_out) + d
        valid = ((idx >= 0) & (idx < n_out)).astype(M.dtype)
        blocks.append(M[jnp.clip(idx, 0, n_out - 1)] * valid[:, None])
    return jnp.concatenate(blocks, axis=0)


# --------------------------------------------------------------------------
# Pallas kernel A: separable bilinear sampling + 9-tap (3x3 conv) patches
# --------------------------------------------------------------------------

def _sample_taps_kernel(x_ref, cxT_ref, ryS_ref, p_ref):
    # x:   [bc*H, W]      bf16   (bc channel-images of the current chunk)
    # cxT: [W, 3*Wo]      bf16   (column operator with dx = -1/0/+1 shifts folded in)
    # ryS: [3*Ho, H]      bf16   (row operator with dy shifts folded in)
    # p:   [bc, 3*Ho, 3*Wo] bf16 (tap (dy,dx) lives in block [dy*Ho:, dx*Wo:])
    bc = p_ref.shape[0]
    H = ryS_ref.shape[1]
    t = jnp.dot(x_ref[...], cxT_ref[...],
                preferred_element_type=jnp.float32)       # [bc*H, 3*Wo], M = bc*H rows
    t = t.astype(jnp.bfloat16)
    ry = ryS_ref[...]
    for b in range(bc):                                    # small, unrolled
        tb = t[b * H:(b + 1) * H, :]                       # [H, 3*Wo]
        pb = jnp.dot(ry, tb, preferred_element_type=jnp.float32)   # [3*Ho, 3*Wo]
        p_ref[b, :, :] = pb.astype(p_ref.dtype)


def sample_taps_pallas(x2, cxT, ryS, *, n_imgs, H, chunk=8):
    """x2: [n_imgs*H, W] bf16 -> P: [n_imgs, 3*Ho, 3*Wo] bf16."""
    W = x2.shape[1]
    Ho3 = ryS.shape[0]
    Wo3 = cxT.shape[1]
    bc = _largest_divisor_leq(n_imgs, chunk)
    if (bc * H) % 8 != 0 and bc != n_imgs:
        bc = n_imgs                                        # keep (8,128) block rule happy
    return pl.pallas_call(
        _sample_taps_kernel,
        out_shape=jax.ShapeDtypeStruct((n_imgs, Ho3, Wo3), jnp.bfloat16),
        grid=(n_imgs // bc,),
        in_specs=[
            pl.BlockSpec((bc * H, W), lambda i: (i, 0)),
            pl.BlockSpec((W, Wo3), lambda i: (0, 0)),
            pl.BlockSpec((Ho3, H), lambda i: (0, 0)),
        ],
        out_specs=pl.BlockSpec((bc, Ho3, Wo3), lambda i: (i, 0, 0)),
        compiler_params=pltpu.CompilerParams(
            dimension_semantics=("parallel",),
            vmem_limit_bytes=_VMEM_LIMIT),
    )(x2, cxT, ryS)


# --------------------------------------------------------------------------
# Pallas kernel B: fused predictor (conv via patches + ReLU + 1x1) + soft-argmax,
# batched over N (single wide matmul per grid step).
# --------------------------------------------------------------------------

def _predictor_softargmax_kernel(p_ref, w1_ref, b1_ref, w2_ref, b2_ref, cg_ref,
                                 maps_ref, coord_ref):
    # p:  [C*9, bn*HoWo] bf16   w1: [nf, C*9] bf16   b1: [nf, 1] f32
    # w2: [K, nf] f32           b2: [K, 1] f32        cg: [K, HoWo] f32
    HoWo = cg_ref.shape[1]
    bn = p_ref.shape[1] // HoWo
    K = w2_ref.shape[0]
    h = jnp.dot(w1_ref[...], p_ref[...], preferred_element_type=jnp.float32)
    h = jnp.maximum(h + b1_ref[...], 0.0)                       # [nf, bn*HoWo]
    hm = jnp.dot(w2_ref[...], h, preferred_element_type=jnp.float32) + b2_ref[...]
    cg = cg_ref[...]
    for b in range(bn):                                         # small, unrolled
        seg = hm[:, b * HoWo:(b + 1) * HoWo]                    # [K, HoWo]
        m = jnp.max(seg, axis=-1, keepdims=True)
        e = jnp.exp(seg - m)
        s = jnp.sum(e, axis=-1, keepdims=True)
        probs = e / s                    # exact normalization (reference parity)
        maps_ref[:, b * HoWo:(b + 1) * HoWo] = probs.astype(maps_ref.dtype)
        c = jnp.sum(probs * cg, axis=-1, keepdims=True)          # [K, 1]
        coord_ref[:, b * 128:(b + 1) * 128] = jnp.broadcast_to(c, (K, 128))


def predictor_softargmax_pallas(patches2, w1m, b1, w2, b2, cgrid, *, N, HoWo, chunk=8):
    """patches2: [C*9, N*HoWo] bf16 -> (maps [K, N*HoWo] f32, coords [K, N*128] f32)."""
    C9 = patches2.shape[0]
    nf = w1m.shape[0]
    K = w2.shape[0]
    bn = _pick_bn(N, HoWo, chunk)
    return pl.pallas_call(
        _predictor_softargmax_kernel,
        out_shape=(jax.ShapeDtypeStruct((K, N * HoWo), jnp.float32),
                   jax.ShapeDtypeStruct((K, N * 128), jnp.float32)),
        grid=(N // bn,),
        in_specs=[
            pl.BlockSpec((C9, bn * HoWo), lambda i: (0, i)),
            pl.BlockSpec((nf, C9), lambda i: (0, 0)),
            pl.BlockSpec((nf, 1), lambda i: (0, 0)),
            pl.BlockSpec((K, nf), lambda i: (0, 0)),
            pl.BlockSpec((K, 1), lambda i: (0, 0)),
            pl.BlockSpec((K, HoWo), lambda i: (0, 0)),
        ],
        out_specs=(pl.BlockSpec((K, bn * HoWo), lambda i: (0, i)),
                   pl.BlockSpec((K, bn * 128), lambda i: (0, i))),
        compiler_params=pltpu.CompilerParams(
            dimension_semantics=("parallel",),
            vmem_limit_bytes=_VMEM_LIMIT),
    )(patches2, w1m, b1, w2, b2, cgrid)


# --------------------------------------------------------------------------
# Jitted per-transformer forward (all glue transposes are trace-time XLA ops)
# --------------------------------------------------------------------------

@jax.jit
def _transformer_forward(x, ryS, cxT, w1m, b1, w2, b2, cgrid):
    N, C, H, W = x.shape
    Ho = ryS.shape[0] // 3
    Wo = cxT.shape[1] // 3
    K = w2.shape[0]

    x2 = x.reshape(N * C * H, W).astype(jnp.bfloat16)
    P = sample_taps_pallas(x2, cxT, ryS, n_imgs=N * C, H=H)      # [N*C, 3Ho, 3Wo]

    # Rearrange taps into (c, ky, kx) rows and (n, a, b) lane-major columns so the
    # predictor does a single wide matmul per batch chunk.
    patches2 = (P.reshape(N, C, 3, Ho, 3, Wo)
                 .transpose(1, 2, 4, 0, 3, 5)
                 .reshape(C * 9, N * Ho * Wo))

    maps2, coords2 = predictor_softargmax_pallas(
        patches2, w1m, b1, w2, b2, cgrid, N=N, HoWo=Ho * Wo)

    maps = maps2.reshape(K, N, Ho, Wo).transpose(1, 0, 2, 3)      # [N, K, Ho, Wo]
    coords = coords2.reshape(K, N, 128)[:, :, 0].T                 # [N, K]
    return maps, coords


# --------------------------------------------------------------------------
# Transformer (spatial-transformer base) and TransformerSequence container
# --------------------------------------------------------------------------

class TransformerPallas:
    """Spatial-transformer stage.

    The abstract `predictor_cls` is realized as a pose predictor:
    conv3x3(in_channels->nf, padding=1) + ReLU + conv1x1(nf->num_outputs) producing
    heatmaps, followed by a spatial soft-argmax yielding (u, v) coordinates.
    """

    def __init__(self, in_channels, nf, ulim=(-1.0, 1.0), vlim=(-1.0, 1.0),
                 return_u=True, return_v=True, periodic_u=False, periodic_v=False,
                 rescale=True, align_corners=False, key=None):
        self.in_channels = in_channels
        self.nf = nf
        self.ulim = ulim
        self.vlim = vlim
        self.return_u = return_u
        self.return_v = return_v
        self.rescale = rescale
        self.align_corners = align_corners  # False == torch F.grid_sample default
        self.num_outputs = 2 if (return_u and return_v) else 1
        # TODO(synk): periodic_u / periodic_v (circular soft-argmax) not implemented.

        k1, k2 = jax.random.split(key, 2)
        # deterministic synthetic parameters (not a checkpoint); hoisted to call-ready form
        w1 = 0.1 * jax.random.normal(k1, (nf, in_channels, 3, 3), jnp.float32)
        self.w1_mat = w1.reshape(nf, in_channels * 9).astype(jnp.bfloat16)
        self.b1 = jnp.zeros((nf, 1), jnp.float32)
        self.w2 = 0.1 * jax.random.normal(k2, (self.num_outputs, nf), jnp.float32)
        self.b2 = jnp.zeros((self.num_outputs, 1), jnp.float32)
        self._grid_cache = {}

    # -- grid-dependent constants (built once per (H, W, grid_size), cached) --
    def _grid_constants(self, H, W, grid_size, transform):
        key = (H, W, tuple(grid_size), self.align_corners)
        if transform is None and key in self._grid_cache:
            return self._grid_cache[key]

        grid = identity_grid(grid_size, self.ulim, self.vlim)          # [Ho, Wo, 2]
        if transform is not None:
            grid = transform(grid)
        Ho, Wo = int(grid.shape[0]), int(grid.shape[1])

        # TODO(synk): the separable (row x column) sampler is exact for identity /
        # axis-aligned grids (the only ones produced here); rotations/shears need a
        # 4-tap gather sampler with scalar-prefetched corner indices.
        us = grid[0, :, 0]      # x-coords, constant along rows
        vs = grid[:, 0, 1]      # y-coords, constant along columns
        Ry = bilinear_1d_matrix(vs, H, self.align_corners)              # [Ho, H]
        Cx = bilinear_1d_matrix(us, W, self.align_corners)              # [Wo, W]
        ryS = conv3_shift_stack(Ry, Ho).astype(jnp.bfloat16)            # [3*Ho, H]
        cxT = conv3_shift_stack(Cx, Wo).astype(jnp.bfloat16).T          # [W, 3*Wo]

        ug = grid[..., 0].reshape(1, Ho * Wo)
        vg = grid[..., 1].reshape(1, Ho * Wo)
        if self.return_u and self.return_v:
            cgrid = jnp.concatenate([ug, vg], axis=0).astype(jnp.float32)
        elif self.return_u:
            cgrid = ug.astype(jnp.float32)
        else:
            cgrid = vg.astype(jnp.float32)

        consts = (ryS, cxT, cgrid, Ho, Wo)
        if transform is None:
            self._grid_cache[key] = consts
        return consts

    def transform_from_params(self, *params):
        # TODO(synk): abstract in the base class; concrete subclasses (ShiftX/ShiftY/
        # Rotation, ...) define the grid-to-grid transform.
        return None

    def forward(self, x, transform=None, grid_size=None, padding_mode="zeros"):
        N, C, H, W = x.shape
        if grid_size is None:
            grid_size = (H, W)
        # TODO(synk): only padding_mode='zeros' is implemented (out-of-range taps -> 0);
        # 'border'/'reflection' fall back to zeros semantics.
        ryS, cxT, cgrid, Ho, Wo = self._grid_constants(H, W, grid_size, transform)

        maps, coords = _transformer_forward(
            x, ryS, cxT, self.w1_mat, self.b1, self.w2, self.b2, cgrid)

        urad = (self.ulim[1] - self.ulim[0]) / 2.0 if self.rescale else 1.0
        vrad = (self.vlim[1] - self.vlim[0]) / 2.0 if self.rescale else 1.0
        if self.return_u and self.return_v:
            params = (coords[:, 0] * urad, coords[:, 1] * vrad)
        elif self.return_u:
            params = (coords[:, 0] * urad,)
        else:
            params = (coords[:, 0] * vrad,)

        new_transform = self.transform_from_params(*params)
        # TODO(synk): compose `transform` with `new_transform` once the concrete
        # GridTransform classes of the original repo are ported.
        return {"transform": new_transform, "params": params, "maps": maps}

    __call__ = forward


class TransformerSequencePallas:
    """Sequence of Transformer modules applied iteratively (mirrors TransformerSequence)."""

    def __init__(self, *transformers):
        self.transformers = list(transformers)

    def forward(self, x, transform=None, grid_size=None, padding_mode="zeros"):
        params, heatmaps, transforms = [], [], []
        for tf in self.transformers:
            out_dict = tf.forward(x, transform, grid_size=grid_size,
                                  padding_mode=padding_mode)
            transform = out_dict["transform"]
            transforms.append(transform)
            params.append(out_dict["params"])
            heatmaps.append(out_dict["maps"])
        return {"transform": transforms, "params": params, "maps": heatmaps}

    __call__ = forward


# --------------------------------------------------------------------------

if __name__ == "__main__":
    key = jax.random.PRNGKey(0)
    kx, k1, k2, k3 = jax.random.split(key, 4)

    N, C, H, W = 2, 4, 16, 16
    x = jax.random.normal(kx, (N, C, H, W), dtype=jnp.float32)

    seq = TransformerSequencePallas(
        TransformerPallas(in_channels=C, nf=8, return_u=True, return_v=True, key=k1),
        TransformerPallas(in_channels=C, nf=8, return_u=True, return_v=False, key=k2),
        TransformerPallas(in_channels=C, nf=8, return_u=False, return_v=True, key=k3),
    )

    out = seq.forward(x)
    jax.block_until_ready(out["maps"])
    jax.block_until_ready(out["params"])
    print("KERNEL_OK")
</pallas_src>

<mosaic_0001>
module attributes {stable_mosaic.version = 11 : i64} {
  func.func @_sample_taps_kernel(%arg0: i32, %arg1: memref<128x16xbf16, #tpu.memory_space<vmem>>, %arg2: memref<16x48xbf16, #tpu.memory_space<vmem>>, %arg3: memref<48x16xbf16, #tpu.memory_space<vmem>>, %arg4: memref<8x48x48xbf16, #tpu.memory_space<vmem>>) attributes {dimension_semantics = [#tpu.dimension_semantics<parallel>], iteration_bounds = array<i64: 1>, scalar_prefetch = 0 : i64, scratch_operands = 0 : i64, tpu.core_type = #tpu.core_type<tc>, window_params = [{transform_indices = @transform_0, window_bounds = array<i64: 128, 16>}, {pipeline_mode = #tpu.pipeline_mode<synchronous>, transform_indices = @transform_1, window_bounds = array<i64: 16, 48>}, {pipeline_mode = #tpu.pipeline_mode<synchronous>, transform_indices = @transform_2, window_bounds = array<i64: 48, 16>}, {transform_indices = @transform_3, window_bounds = array<i64: 8, 48, 48>}]} {
    %c0 = arith.constant 0 : index
    %c0_0 = arith.constant 0 : index
    %0 = vector.load %arg1[%c0, %c0_0] : memref<128x16xbf16, #tpu.memory_space<vmem>>, vector<128x16xbf16>
    %c0_1 = arith.constant 0 : index
    %c0_2 = arith.constant 0 : index
    %1 = vector.load %arg2[%c0_1, %c0_2] : memref<16x48xbf16, #tpu.memory_space<vmem>>, vector<16x48xbf16>
    %cst = arith.constant dense<0.000000e+00> : vector<128x48xf32>
    %2 = tpu.matmul %0, %1, %cst {dimension_numbers = #tpu.dot_dimension_numbers<[1], [0], [0], [1], [0, 0, 1, 1], [], []>} : vector<128x16xbf16>, vector<16x48xbf16>, vector<128x48xf32> -> vector<128x48xf32>
    %3 = arith.truncf %2 : vector<128x48xf32> to vector<128x48xbf16>
    %c0_3 = arith.constant 0 : index
    %c0_4 = arith.constant 0 : index
    %4 = vector.load %arg3[%c0_3, %c0_4] : memref<48x16xbf16, #tpu.memory_space<vmem>>, vector<48x16xbf16>
    %5 = vector.extract_strided_slice %3 {offsets = [0, 0], sizes = [16, 48], strides = [1, 1]} : vector<128x48xbf16> to vector<16x48xbf16>
    %cst_5 = arith.constant dense<0.000000e+00> : vector<48x48xf32>
    %6 = tpu.matmul %4, %5, %cst_5 {dimension_numbers = #tpu.dot_dimension_numbers<[1], [0], [0], [1], [0, 0, 1, 1], [], []>} : vector<48x16xbf16>, vector<16x48xbf16>, vector<48x48xf32> -> vector<48x48xf32>
    %7 = arith.truncf %6 : vector<48x48xf32> to vector<48x48xbf16>
    %c0_6 = arith.constant 0 : index
    %c0_7 = arith.constant 0 : index
    %c0_8 = arith.constant 0 : index
    %8 = vector.load %arg4[%c0_6, %c0_7, %c0_8] : memref<8x48x48xbf16, #tpu.memory_space<vmem>>, vector<1x48x48xbf16>
    %9 = vector.shape_cast %8 : vector<1x48x48xbf16> to vector<48x48xbf16>
    %10 = vector.shape_cast %7 : vector<48x48xbf16> to vector<1x48x48xbf16>
    tpu.vector_store %arg4[%c0_6, %c0_7, %c0_8], %10 {strides = array<i32>} : memref<8x48x48xbf16, #tpu.memory_space<vmem>>, vector<1x48x48xbf16>,
    %11 = vector.extract_strided_slice %3 {offsets = [16, 0], sizes = [16, 48], strides = [1, 1]} : vector<128x48xbf16> to vector<16x48xbf16>
    %cst_9 = arith.constant dense<0.000000e+00> : vector<48x48xf32>
    %12 = tpu.matmul %4, %11, %cst_9 {dimension_numbers = #tpu.dot_dimension_numbers<[1], [0], [0], [1], [0, 0, 1, 1], [], []>} : vector<48x16xbf16>, vector<16x48xbf16>, vector<48x48xf32> -> vector<48x48xf32>
    %13 = arith.truncf %12 : vector<48x48xf32> to vector<48x48xbf16>
    %c1 = arith.constant 1 : index
    %c0_10 = arith.constant 0 : index
    %c0_11 = arith.constant 0 : index
    %14 = vector.load %arg4[%c1, %c0_10, %c0_11] : memref<8x48x48xbf16, #tpu.memory_space<vmem>>, vector<1x48x48xbf16>
    %15 = vector.shape_cast %14 : vector<1x48x48xbf16> to vector<48x48xbf16>
    %16 = vector.shape_cast %13 : vector<48x48xbf16> to vector<1x48x48xbf16>
    tpu.vector_store %arg4[%c1, %c0_10, %c0_11], %16 {strides = array<i32>} : memref<8x48x48xbf16, #tpu.memory_space<vmem>>, vector<1x48x48xbf16>,
    %17 = vector.extract_strided_slice %3 {offsets = [32, 0], sizes = [16, 48], strides = [1, 1]} : vector<128x48xbf16> to vector<16x48xbf16>
    %cst_12 = arith.constant dense<0.000000e+00> : vector<48x48xf32>
    %18 = tpu.matmul %4, %17, %cst_12 {dimension_numbers = #tpu.dot_dimension_numbers<[1], [0], [0], [1], [0, 0, 1, 1], [], []>} : vector<48x16xbf16>, vector<16x48xbf16>, vector<48x48xf32> -> vector<48x48xf32>
    %19 = arith.truncf %18 : vector<48x48xf32> to vector<48x48xbf16>
    %c2 = arith.constant 2 : index
    %c0_13 = arith.constant 0 : index
    %c0_14 = arith.constant 0 : index
    %20 = vector.load %arg4[%c2, %c0_13, %c0_14] : memref<8x48x48xbf16, #tpu.memory_space<vmem>>, vector<1x48x48xbf16>
    %21 = vector.shape_cast %20 : vector<1x48x48xbf16> to vector<48x48xbf16>
    %22 = vector.shape_cast %19 : vector<48x48xbf16> to vector<1x48x48xbf16>
    tpu.vector_store %arg4[%c2, %c0_13, %c0_14], %22 {strides = array<i32>} : memref<8x48x48xbf16, #tpu.memory_space<vmem>>, vector<1x48x48xbf16>,
    %23 = vector.extract_strided_slice %3 {offsets = [48, 0], sizes = [16, 48], strides = [1, 1]} : vector<128x48xbf16> to vector<16x48xbf16>
    %cst_15 = arith.constant dense<0.000000e+00> : vector<48x48xf32>
    %24 = tpu.matmul %4, %23, %cst_15 {dimension_numbers = #tpu.dot_dimension_numbers<[1], [0], [0], [1], [0, 0, 1, 1], [], []>} : vector<48x16xbf16>, vector<16x48xbf16>, vector<48x48xf32> -> vector<48x48xf32>
    %25 = arith.truncf %24 : vector<48x48xf32> to vector<48x48xbf16>
    %c3 = arith.constant 3 : index
    %c0_16 = arith.constant 0 : index
    %c0_17 = arith.constant 0 : index
    %26 = vector.load %arg4[%c3, %c0_16, %c0_17] : memref<8x48x48xbf16, #tpu.memory_space<vmem>>, vector<1x48x48xbf16>
    %27 = vector.shape_cast %26 : vector<1x48x48xbf16> to vector<48x48xbf16>
    %28 = vector.shape_cast %25 : vector<48x48xbf16> to vector<1x48x48xbf16>
    tpu.vector_store %arg4[%c3, %c0_16, %c0_17], %28 {strides = array<i32>} : memref<8x48x48xbf16, #tpu.memory_space<vmem>>, vector<1x48x48xbf16>,
    %29 = vector.extract_strided_slice %3 {offsets = [64, 0], sizes = [16, 48], strides = [1, 1]} : vector<128x48xbf16> to vector<16x48xbf16>
    %cst_18 = arith.constant dense<0.000000e+00> : vector<48x48xf32>
    %30 = tpu.matmul %4, %29, %cst_18 {dimension_numbers = #tpu.dot_dimension_numbers<[1], [0], [0], [1], [0, 0, 1, 1], [], []>} : vector<48x16xbf16>, vector<16x48xbf16>, vector<48x48xf32> -> vector<48x48xf32>
    %31 = arith.truncf %30 : vector<48x48xf32> to vector<48x48xbf16>
    %c4 = arith.constant 4 : index
    %c0_19 = arith.constant 0 : index
    %c0_20 = arith.constant 0 : index
    %32 = vector.load %arg4[%c4, %c0_19, %c0_20] : memref<8x48x48xbf16, #tpu.memory_space<vmem>>, vector<1x48x48xbf16>
    %33 = vector.shape_cast %32 : vector<1x48x48xbf16> to vector<48x48xbf16>
    %34 = vector.shape_cast %31 : vector<48x48xbf16> to vector<1x48x48xbf16>
    tpu.vector_store %arg4[%c4, %c0_19, %c0_20], %34 {strides = array<i32>} : memref<8x48x48xbf16, #tpu.memory_space<vmem>>, vector<1x48x48xbf16>,
    %35 = vector.extract_strided_slice %3 {offsets = [80, 0], sizes = [16, 48], strides = [1, 1]} : vector<128x48xbf16> to vector<16x48xbf16>
    %cst_21 = arith.constant dense<0.000000e+00> : vector<48x48xf32>
    %36 = tpu.matmul %4, %35, %cst_21 {dimension_numbers = #tpu.dot_dimension_numbers<[1], [0], [0], [1], [0, 0, 1, 1], [], []>} : vector<48x16xbf16>, vector<16x48xbf16>, vector<48x48xf32> -> vector<48x48xf32>
    %37 = arith.truncf %36 : vector<48x48xf32> to vector<48x48xbf16>
    %c5 = arith.constant 5 : index
    %c0_22 = arith.constant 0 : index
    %c0_23 = arith.constant 0 : index
    %38 = vector.load %arg4[%c5, %c0_22, %c0_23] : memref<8x48x48xbf16, #tpu.memory_space<vmem>>, vector<1x48x48xbf16>
    %39 = vector.shape_cast %38 : vector<1x48x48xbf16> to vector<48x48xbf16>
    %40 = vector.shape_cast %37 : vector<48x48xbf16> to vector<1x48x48xbf16>
    tpu.vector_store %arg4[%c5, %c0_22, %c0_23], %40 {strides = array<i32>} : memref<8x48x48xbf16, #tpu.memory_space<vmem>>, vector<1x48x48xbf16>,
    %41 = vector.extract_strided_slice %3 {offsets = [96, 0], sizes = [16, 48], strides = [1, 1]} : vector<128x48xbf16> to vector<16x48xbf16>
    %cst_24 = arith.constant dense<0.000000e+00> : vector<48x48xf32>
    %42 = tpu.matmul %4, %41, %cst_24 {dimension_numbers = #tpu.dot_dimension_numbers<[1], [0], [0], [1], [0, 0, 1, 1], [], []>} : vector<48x16xbf16>, vector<16x48xbf16>, vector<48x48xf32> -> vector<48x48xf32>
    %43 = arith.truncf %42 : vector<48x48xf32> to vector<48x48xbf16>
    %c6 = arith.constant 6 : index
    %c0_25 = arith.constant 0 : index
    %c0_26 = arith.constant 0 : index
    %44 = vector.load %arg4[%c6, %c0_25, %c0_26] : memref<8x48x48xbf16, #tpu.memory_space<vmem>>, vector<1x48x48xbf16>
    %45 = vector.shape_cast %44 : vector<1x48x48xbf16> to vector<48x48xbf16>
    %46 = vector.shape_cast %43 : vector<48x48xbf16> to vector<1x48x48xbf16>
    tpu.vector_store %arg4[%c6, %c0_25, %c0_26], %46 {strides = array<i32>} : memref<8x48x48xbf16, #tpu.memory_space<vmem>>, vector<1x48x48xbf16>,
    %47 = vector.extract_strided_slice %3 {offsets = [112, 0], sizes = [16, 48], strides = [1, 1]} : vector<128x48xbf16> to vector<16x48xbf16>
    %cst_27 = arith.constant dense<0.000000e+00> : vector<48x48xf32>
    %48 = tpu.matmul %4, %47, %cst_27 {dimension_numbers = #tpu.dot_dimension_numbers<[1], [0], [0], [1], [0, 0, 1, 1], [], []>} : vector<48x16xbf16>, vector<16x48xbf16>, vector<48x48xf32> -> vector<48x48xf32>
    %49 = arith.truncf %48 : vector<48x48xf32> to vector<48x48xbf16>
    %c7 = arith.constant 7 : index
    %c0_28 = arith.constant 0 : index
    %c0_29 = arith.constant 0 : index
    %50 = vector.load %arg4[%c7, %c0_28, %c0_29] : memref<8x48x48xbf16, #tpu.memory_space<vmem>>, vector<1x48x48xbf16>
    %51 = vector.shape_cast %50 : vector<1x48x48xbf16> to vector<48x48xbf16>
    %52 = vector.shape_cast %49 : vector<48x48xbf16> to vector<1x48x48xbf16>
    tpu.vector_store %arg4[%c7, %c0_28, %c0_29], %52 {strides = array<i32>} : memref<8x48x48xbf16, #tpu.memory_space<vmem>>, vector<1x48x48xbf16>,
    return
  }
  func.func @transform_0(%arg0: i32) -> (i32, i32) {
    %c0_i32 = arith.constant 0 : i32
    %c0_i32_0 = arith.constant 0 : i32
    return %arg0, %c0_i32 : i32, i32
  }
  func.func @transform_1(%arg0: i32) -> (i32, i32) {
    %c0_i32 = arith.constant 0 : i32
    %c0_i32_0 = arith.constant 0 : i32
    %c0_i32_1 = arith.constant 0 : i32
    return %c0_i32, %c0_i32_0 : i32, i32
  }
  func.func @transform_2(%arg0: i32) -> (i32, i32) {
    %c0_i32 = arith.constant 0 : i32
    %c0_i32_0 = arith.constant 0 : i32
    %c0_i32_1 = arith.constant 0 : i32
    return %c0_i32, %c0_i32_0 : i32, i32
  }
  func.func @transform_3(%arg0: i32) -> (i32, i32, i32) {
    %c0_i32 = arith.constant 0 : i32
    %c0_i32_0 = arith.constant 0 : i32
    %c0_i32_1 = arith.constant 0 : i32
    return %arg0, %c0_i32, %c0_i32_0 : i32, i32, i32
  }
}

module attributes {stable_mosaic.version = 11 : i64} {
  func.func @_predictor_softargmax_kernel(%arg0: i32, %arg1: memref<36x512xbf16, #tpu.memory_space<vmem>>, %arg2: memref<8x36xbf16, #tpu.memory_space<vmem>>, %arg3: memref<8x1xf32, #tpu.memory_space<vmem>>, %arg4: memref<2x8xf32, #tpu.memory_space<vmem>>, %arg5: memref<2x1xf32, #tpu.memory_space<vmem>>, %arg6: memref<2x256xf32, #tpu.memory_space<vmem>>, %arg7: memref<2x512xf32, #tpu.memory_space<vmem>>, %arg8: memref<2x256xf32, #tpu.memory_space<vmem>>) attributes {dimension_semantics = [#tpu.dimension_semantics<parallel>], iteration_bounds = array<i64: 1>, scalar_prefetch = 0 : i64, scratch_operands = 0 : i64, tpu.core_type = #tpu.core_type<tc>, window_params = [{transform_indices = @transform_0, window_bounds = array<i64: 36, 512>}, {pipeline_mode = #tpu.pipeline_mode<synchronous>, transform_indices = @transform_1, window_bounds = array<i64: 8, 36>}, {pipeline_mode = #tpu.pipeline_mode<synchronous>, transform_indices = @transform_2, window_bounds = array<i64: 8, 1>}, {pipeline_mode = #tpu.pipeline_mode<synchronous>, transform_indices = @transform_3, window_bounds = array<i64: 2, 8>}, {pipeline_mode = #tpu.pipeline_mode<synchronous>, transform_indices = @transform_4, window_bounds = array<i64: 2, 1>}, {pipeline_mode = #tpu.pipeline_mode<synchronous>, transform_indices = @transform_5, window_bounds = array<i64: 2, 256>}, {transform_indices = @transform_6, window_bounds = array<i64: 2, 512>}, {transform_indices = @transform_7, window_bounds = array<i64: 2, 256>}]} {
    %c0 = arith.constant 0 : index
    %c0_0 = arith.constant 0 : index
    %0 = vector.load %arg2[%c0, %c0_0] : memref<8x36xbf16, #tpu.memory_space<vmem>>, vector<8x36xbf16>
    %c0_1 = arith.constant 0 : index
    %c0_2 = arith.constant 0 : index
    %1 = vector.load %arg1[%c0_1, %c0_2] : memref<36x512xbf16, #tpu.memory_space<vmem>>, vector<36x512xbf16>
    %cst = arith.constant dense<0.000000e+00> : vector<8x512xf32>
    %2 = tpu.matmul %0, %1, %cst {dimension_numbers = #tpu.dot_dimension_numbers<[1], [0], [0], [1], [0, 0, 1, 1], [], []>} : vector<8x36xbf16>, vector<36x512xbf16>, vector<8x512xf32> -> vector<8x512xf32>
    %c0_3 = arith.constant 0 : index
    %c0_4 = arith.constant 0 : index
    %3 = vector.load %arg3[%c0_3, %c0_4] : memref<8x1xf32, #tpu.memory_space<vmem>>, vector<8x1xf32>
    %4 = vector.broadcast %3 : vector<8x1xf32> to vector<8x512xf32>
    %5 = arith.addf %2, %4 : vector<8x512xf32>
    %cst_5 = arith.constant 0.000000e+00 : f32
    %6 = vector.broadcast %cst_5 : f32 to vector<8x512xf32>
    %7 = arith.maximumf %5, %6 : vector<8x512xf32>
    %c0_6 = arith.constant 0 : index
    %c0_7 = arith.constant 0 : index
    %8 = vector.load %arg4[%c0_6, %c0_7] : memref<2x8xf32, #tpu.memory_space<vmem>>, vector<2x8xf32>
    %cst_8 = arith.constant dense<0.000000e+00> : vector<2x512xf32>
    %9 = tpu.matmul %8, %7, %cst_8 {dimension_numbers = #tpu.dot_dimension_numbers<[1], [0], [0], [1], [0, 0, 1, 1], [], []>} : vector<2x8xf32>, vector<8x512xf32>, vector<2x512xf32> -> vector<2x512xf32>
    %c0_9 = arith.constant 0 : index
    %c0_10 = arith.constant 0 : index
    %10 = vector.load %arg5[%c0_9, %c0_10] : memref<2x1xf32, #tpu.memory_space<vmem>>, vector<2x1xf32>
    %11 = vector.broadcast %10 : vector<2x1xf32> to vector<2x512xf32>
    %12 = arith.addf %9, %11 : vector<2x512xf32>
    %c0_11 = arith.constant 0 : index
    %c0_12 = arith.constant 0 : index
    %13 = vector.load %arg6[%c0_11, %c0_12] : memref<2x256xf32, #tpu.memory_space<vmem>>, vector<2x256xf32>
    %14 = vector.extract_strided_slice %12 {offsets = [0, 0], sizes = [2, 256], strides = [1, 1]} : vector<2x512xf32> to vector<2x256xf32>
    %cst_13 = arith.constant dense<0xFF800000> : vector<2xf32>
    %15 = vector.multi_reduction <maximumf>, %14, %cst_13 [1] : vector<2x256xf32> to vector<2xf32>
    %16 = vector.shape_cast %15 : vector<2xf32> to vector<2x1xf32>
    %17 = vector.broadcast %16 : vector<2x1xf32> to vector<2x256xf32>
    %18 = arith.subf %14, %17 : vector<2x256xf32>
    %19 = math.exp %18 : vector<2x256xf32>
    %cst_14 = arith.constant dense<0.000000e+00> : vector<2xf32>
    %20 = vector.multi_reduction <add>, %19, %cst_14 [1] : vector<2x256xf32> to vector<2xf32>
    %21 = vector.shape_cast %20 : vector<2xf32> to vector<2x1xf32>
    %22 = vector.broadcast %21 : vector<2x1xf32> to vector<2x256xf32>
    %23 = arith.divf %19, %22 : vector<2x256xf32>
    %c0_15 = arith.constant 0 : index
    %c0_16 = arith.constant 0 : index
    %24 = vector.load %arg7[%c0_15, %c0_16] : memref<2x512xf32, #tpu.memory_space<vmem>>, vector<2x256xf32>
    tpu.vector_store %arg7[%c0_15, %c0_16], %23 {strides = array<i32>} : memref<2x512xf32, #tpu.memory_space<vmem>>, vector<2x256xf32>,
    %25 = arith.mulf %23, %13 : vector<2x256xf32>
    %cst_17 = arith.constant dense<0.000000e+00> : vector<2xf32>
    %26 = vector.multi_reduction <add>, %25, %cst_17 [1] : vector<2x256xf32> to vector<2xf32>
    %27 = vector.shape_cast %26 : vector<2xf32> to vector<2x1xf32>
    %28 = vector.shape_cast %27 : vector<2x1xf32> to vector<2x1xf32>
    %29 = vector.broadcast %28 : vector<2x1xf32> to vector<2x128xf32>
    %c0_18 = arith.constant 0 : index
    %c0_19 = arith.constant 0 : index
    %30 = vector.load %arg8[%c0_18, %c0_19] : memref<2x256xf32, #tpu.memory_space<vmem>>, vector<2x128xf32>
    tpu.vector_store %arg8[%c0_18, %c0_19], %29 {strides = array<i32>} : memref<2x256xf32, #tpu.memory_space<vmem>>, vector<2x128xf32>,
    %31 = vector.extract_strided_slice %12 {offsets = [0, 256], sizes = [2, 256], strides = [1, 1]} : vector<2x512xf32> to vector<2x256xf32>
    %cst_20 = arith.constant dense<0xFF800000> : vector<2xf32>
    %32 = vector.multi_reduction <maximumf>, %31, %cst_20 [1] : vector<2x256xf32> to vector<2xf32>
    %33 = vector.shape_cast %32 : vector<2xf32> to vector<2x1xf32>
    %34 = vector.broadcast %33 : vector<2x1xf32> to vector<2x256xf32>
    %35 = arith.subf %31, %34 : vector<2x256xf32>
    %36 = math.exp %35 : vector<2x256xf32>
    %cst_21 = arith.constant dense<0.000000e+00> : vector<2xf32>
    %37 = vector.multi_reduction <add>, %36, %cst_21 [1] : vector<2x256xf32> to vector<2xf32>
    %38 = vector.shape_cast %37 : vector<2xf32> to vector<2x1xf32>
    %39 = vector.broadcast %38 : vector<2x1xf32> to vector<2x256xf32>
    %40 = arith.divf %36, %39 : vector<2x256xf32>
    %c0_22 = arith.constant 0 : index
    %c256 = arith.constant 256 : index
    %41 = vector.load %arg7[%c0_22, %c256] : memref<2x512xf32, #tpu.memory_space<vmem>>, vector<2x256xf32>
    tpu.vector_store %arg7[%c0_22, %c256], %40 {strides = array<i32>} : memref<2x512xf32, #tpu.memory_space<vmem>>, vector<2x256xf32>,
    %42 = arith.mulf %40, %13 : vector<2x256xf32>
    %cst_23 = arith.constant dense<0.000000e+00> : vector<2xf32>
    %43 = vector.multi_reduction <add>, %42, %cst_23 [1] : vector<2x256xf32> to vector<2xf32>
    %44 = vector.shape_cast %43 : vector<2xf32> to vector<2x1xf32>
    %45 = vector.shape_cast %44 : vector<2x1xf32> to vector<2x1xf32>
    %46 = vector.broadcast %45 : vector<2x1xf32> to vector<2x128xf32>
    %c0_24 = arith.constant 0 : index
    %c128 = arith.constant 128 : index
    %47 = vector.load %arg8[%c0_24, %c128] : memref<2x256xf32, #tpu.memory_space<vmem>>, vector<2x128xf32>
    tpu.vector_store %arg8[%c0_24, %c128], %46 {strides = array<i32>} : memref<2x256xf32, #tpu.memory_space<vmem>>, vector<2x128xf32>,
    return
  }
  func.func @transform_0(%arg0: i32) -> (i32, i32) {
    %c0_i32 = arith.constant 0 : i32
    %c0_i32_0 = arith.constant 0 : i32
    return %c0_i32, %arg0 : i32, i32
  }
  func.func @transform_1(%arg0: i32) -> (i32, i32) {
    %c0_i32 = arith.constant 0 : i32
    %c0_i32_0 = arith.constant 0 : i32
    %c0_i32_1 = arith.constant 0 : i32
    return %c0_i32, %c0_i32_0 : i32, i32
  }
  func.func @transform_2(%arg0: i32) -> (i32, i32) {
    %c0_i32 = arith.constant 0 : i32
    %c0_i32_0 = arith.constant 0 : i32
    %c0_i32_1 = arith.constant 0 : i32
    return %c0_i32, %c0_i32_0 : i32, i32
  }
  func.func @transform_3(%arg0: i32) -> (i32, i32) {
    %c0_i32 = arith.constant 0 : i32
    %c0_i32_0 = arith.constant 0 : i32
    %c0_i32_1 = arith.constant 0 : i32
    return %c0_i32, %c0_i32_0 : i32, i32
  }
  func.func @transform_4(%arg0: i32) -> (i32, i32) {
    %c0_i32 = arith.constant 0 : i32
    %c0_i32_0 = arith.constant 0 : i32
    %c0_i32_1 = arith.constant 0 : i32
    return %c0_i32, %c0_i32_0 : i32, i32
  }
  func.func @transform_5(%arg0: i32) -> (i32, i32) {
    %c0_i32 = arith.constant 0 : i32
    %c0_i32_0 = arith.constant 0 : i32
    %c0_i32_1 = arith.constant 0 : i32
    return %c0_i32, %c0_i32_0 : i32, i32
  }
  func.func @transform_6(%arg0: i32) -> (i32, i32) {
    %c0_i32 = arith.constant 0 : i32
    %c0_i32_0 = arith.constant 0 : i32
    return %c0_i32, %arg0 : i32, i32
  }
  func.func @transform_7(%arg0: i32) -> (i32, i32) {
    %c0_i32 = arith.constant 0 : i32
    %c0_i32_0 = arith.constant 0 : i32
    return %c0_i32, %arg0 : i32, i32
  }
}

</mosaic_0001>

<llo_original>
// kernel: _transformer_forward.2
$region0: #{_transformer_forward.2}
  #allocation0 [shape = 'u32[]', space=smem, size = 0x4, offset = 0x4, fixed_abs, tag = 'smem constant byte address 0x4 - core index']
  #allocation1 [shape = 'u32[144,128]{1,0:T(1,128)}', space=vmem, size = 0x12000, scoped, tag = 'internal scratch']
  %s0 = inlined_call_operand.vmem [shape: bf16[128,16], index: 0, kind: input, shape index: {}]
  %s1 = inlined_call_operand.vmem [shape: bf16[16,48], index: 1, kind: input, shape index: {}]
  %s2 = inlined_call_operand.vmem [shape: bf16[48,16], index: 2, kind: input, shape index: {}]
  %s3 = inlined_call_operand.vmem [shape: bf16[8,48,48], index: 3, kind: output, shape index: {}]
  %s4 = sld [smem:[#allocation0]]
  $region22: #{_transformer_forward.2} parent=0
    _
  %s6 = ssub.s32 1, %s4
  %s7 = scalar_select 0, %s6, %s4
  // Predicated region
  $region2: #{_transformer_forward.2} parent=0 // pred_check
    _
  $region3: #{_transformer_forward.2} parent=0 // pred_check_branch
    %9 = sbr.rel (0) target = $region5
  $region4: #{_transformer_forward.2} parent=0 // pred_region
    _
  $region5: #{_transformer_forward.2} parent=0 // pred_fallthru
    _
  // Predicated region
  $region6: #{_transformer_forward.2} parent=0 // pred_check
    _
  $region7: #{_transformer_forward.2} parent=0 // pred_check_branch
    %11 = sbr.rel (0) target = $region9
  $region8: #{_transformer_forward.2} parent=0 // pred_region
    _
  $region9: #{_transformer_forward.2} parent=0 // pred_fallthru
    _
  // Predicated region
  $region10: #{_transformer_forward.2} parent=0 // pred_check
    _
  $region11: #{_transformer_forward.2} parent=0 // pred_check_branch
    %13 = sbr.rel (0) target = $region13
  $region12: #{_transformer_forward.2} parent=0 // pred_region
    _
  $region13: #{_transformer_forward.2} parent=0 // pred_fallthru
    _
  %v15 = vld [vmem:[%s0] sm:$0xf]
  %v16 = vld [vmem:[%s0 + $0x4] sm:$0xf]
  %v17 = vld [vmem:[%s0 + $0x8] sm:$0xf]
  %v18 = vld [vmem:[%s0 + $0xc] sm:$0xf]
  %v19 = vld [vmem:[%s0 + $0x10] sm:$0xf]
  %v20 = vld [vmem:[%s0 + $0x14] sm:$0xf]
  %v21 = vld [vmem:[%s0 + $0x18] sm:$0xf]
  %v22 = vld [vmem:[%s0 + $0x1c] sm:$0xf]
  %v23 = vld [vmem:[%s0 + $0x20] sm:$0xf]
  %v24 = vld [vmem:[%s0 + $0x24] sm:$0xf]
  %v25 = vld [vmem:[%s0 + $0x28] sm:$0xf]
  %v26 = vld [vmem:[%s0 + $0x2c] sm:$0xf]
  %v27 = vld [vmem:[%s0 + $0x30] sm:$0xf]
  %v28 = vld [vmem:[%s0 + $0x34] sm:$0xf]
  %v29 = vld [vmem:[%s0 + $0x38] sm:$0xf]
  %v30 = vld [vmem:[%s0 + $0x3c] sm:$0xf]
  %v31 = vld [vmem:[%s1] sm:$0xf]
  %v32 = vld [vmem:[%s1 + $0x4] sm:$0xf]
  %v49 = vunpack.c.l.b16 %v15
  %v50 = vunpack.c.l.b16 %v16
  %v51 = vunpack.c.l.b16 %v17
  %v52 = vunpack.c.l.b16 %v18
  %v53 = vunpack.c.l.b16 %v19
  %v54 = vunpack.c.l.b16 %v20
  %v55 = vunpack.c.l.b16 %v21
  %v56 = vunpack.c.l.b16 %v22
  %v57 = vunpack.c.l.b16 %v23
  %v58 = vunpack.c.l.b16 %v24
  %v59 = vunpack.c.l.b16 %v25
  %v60 = vunpack.c.l.b16 %v26
  %v61 = vunpack.c.l.b16 %v27
  %v62 = vunpack.c.l.b16 %v28
  %v63 = vunpack.c.l.b16 %v29
  %v64 = vunpack.c.l.b16 %v30
  %v65 = vpack.c.b16 %v50, %v49
  %v66 = vpack.c.b16 %v52, %v51
  %v67 = vpack.c.b16 %v54, %v53
  %v68 = vpack.c.b16 %v56, %v55
  %v69 = vpack.c.b16 %v58, %v57
  %v70 = vpack.c.b16 %v60, %v59
  %v71 = vpack.c.b16 %v62, %v61
  %v72 = vpack.c.b16 %v64, %v63
  %v75 = vunpack.c.l.b16 %v31
  %v76 = vunpack.c.l.b16 %v32
  %v77 = vpack.c.b16 %v76, %v75
  %vm79 = vcmask 130048
  %v81 = vsel %vm79, %v65, 0
  %v84 = vsel %vm79, %v66, 0
  %v87 = vsel %vm79, %v67, 0
  %v90 = vsel %vm79, %v68, 0
  %v93 = vsel %vm79, %v69, 0
  %v96 = vsel %vm79, %v70, 0
  %v99 = vsel %vm79, %v71, 0
  %v102 = vsel %vm79, %v72, 0
  %104 = vmatprep.subr.bf16.mxu0 0
  %105 = vmatpush1.bf16.msra.mxu0 %v77
  %106 = vmatprep.subr.bf16.mxu0 0
  %107 = vmatpush1.bf16.msra.mxu0 0
  %108 = vmatprep.subr.bf16.mxu0 0
  %109 = vmatpush1.bf16.msra.mxu0 0
  %110 = vmatprep.subr.bf16.mxu0 0
  %111 = vmatpush1.bf16.msra.mxu0 0
  %112 = vmatprep.subr.bf16.mxu0 0
  %113 = vmatpush1.bf16.msra.mxu0 0
  %114 = vmatprep.subr.bf16.mxu0 0
  %115 = vmatpush1.bf16.msra.mxu0 0
  %116 = vmatprep.subr.bf16.mxu0 0
  %117 = vmatpush1.bf16.msra.mxu0 0
  %118 = vmatprep.subr.bf16.mxu0 0
  %119 = vmatpush1.bf16.msra.mxu0 0
  %120 = vmatprep.subr.bf16.mxu0 0
  %121 = vmatpush1.bf16.msra.mxu0 0
  %122 = vmatprep.subr.bf16.mxu0 0
  %123 = vmatpush1.bf16.msra.mxu0 0
  %124 = vmatprep.subr.bf16.mxu0 0
  %125 = vmatpush1.bf16.msra.mxu0 0
  %126 = vmatprep.subr.bf16.mxu0 0
  %127 = vmatpush1.bf16.msra.mxu0 0
  %128 = vmatprep.subr.bf16.mxu0 0
  %129 = vmatpush1.bf16.msra.mxu0 0
  %130 = vmatprep.subr.bf16.mxu0 0
  %131 = vmatpush1.bf16.msra.mxu0 0
  %132 = vmatprep.subr.bf16.mxu0 0
  %133 = vmatpush1.bf16.msra.mxu0 0
  %134 = vmatprep.subr.bf16.mxu0 0
  %135 = vmatpush1.bf16.msra.mxu0 0
  %136 = vmatprep.mubr.bf16.mxu0 0
  %137 = vmatmul.mubr.bf16.gmra.mrb[0].mxu0 %v81
  %v138 = vpop.f32.mrb[0].mxu0
  %v139 = vadd.f32 0.0, %v138
  %v140 = vpop.f32.mrb[0].mxu0
  %v141 = vpop.f32.mrb[0].mxu0
  %v142 = vadd.f32 0.0, %v141
  %v143 = vpop.f32.mrb[0].mxu0
  %144 = vmatprep.mubr.bf16.mxu0 0
  %145 = vmatmul.mubr.bf16.gmra.mrb[0].mxu0 %v84
  %v146 = vpop.f32.mrb[0].mxu0
  %v147 = vadd.f32 0.0, %v146
  %v148 = vpop.f32.mrb[0].mxu0
  %v149 = vpop.f32.mrb[0].mxu0
  %v150 = vadd.f32 0.0, %v149
  %v151 = vpop.f32.mrb[0].mxu0
  %152 = vmatprep.mubr.bf16.mxu0 0
  %153 = vmatmul.mubr.bf16.gmra.mrb[0].mxu0 %v87
  %v154 = vpop.f32.mrb[0].mxu0
  %v155 = vadd.f32 0.0, %v154
  %v156 = vpop.f32.mrb[0].mxu0
  %v157 = vpop.f32.mrb[0].mxu0
  %v158 = vadd.f32 0.0, %v157
  %v159 = vpop.f32.mrb[0].mxu0
  %160 = vmatprep.mubr.bf16.mxu0 0
  %161 = vmatmul.mubr.bf16.gmra.mrb[0].mxu0 %v90
  %v162 = vpop.f32.mrb[0].mxu0
  %v163 = vadd.f32 0.0, %v162
  %v164 = vpop.f32.mrb[0].mxu0
  %v165 = vpop.f32.mrb[0].mxu0
  %v166 = vadd.f32 0.0, %v165
  %v167 = vpop.f32.mrb[0].mxu0
  %168 = vmatprep.mubr.bf16.mxu0 0
  %169 = vmatmul.mubr.bf16.gmra.mrb[0].mxu0 %v93
  %v170 = vpop.f32.mrb[0].mxu0
  %v171 = vadd.f32 0.0, %v170
  %v172 = vpop.f32.mrb[0].mxu0
  %v173 = vpop.f32.mrb[0].mxu0
  %v174 = vadd.f32 0.0, %v173
  %v175 = vpop.f32.mrb[0].mxu0
  %176 = vmatprep.mubr.bf16.mxu0 0
  %177 = vmatmul.mubr.bf16.gmra.mrb[0].mxu0 %v96
  %v178 = vpop.f32.mrb[0].mxu0
  %v179 = vadd.f32 0.0, %v178
  %v180 = vpop.f32.mrb[0].mxu0
  %v181 = vpop.f32.mrb[0].mxu0
  %v182 = vadd.f32 0.0, %v181
  %v183 = vpop.f32.mrb[0].mxu0
  %184 = vmatprep.mubr.bf16.mxu0 0
  %185 = vmatmul.mubr.bf16.gmra.mrb[0].mxu0 %v99
  %v186 = vpop.f32.mrb[0].mxu0
  %v187 = vadd.f32 0.0, %v186
  %v188 = vpop.f32.mrb[0].mxu0
  %v189 = vpop.f32.mrb[0].mxu0
  %v190 = vadd.f32 0.0, %v189
  %v191 = vpop.f32.mrb[0].mxu0
  %192 = vmatprep.mubr.bf16.mxu0 0
  %193 = vmatmul.mubr.bf16.gmra.mrb[0].mxu0 %v102
  %v194 = vpop.f32.mrb[0].mxu0
  %v195 = vadd.f32 0.0, %v194
  %v196 = vpop.f32.mrb[0].mxu0
  %v197 = vpop.f32.mrb[0].mxu0
  %v198 = vadd.f32 0.0, %v197
  %v199 = vpop.f32.mrb[0].mxu0
  %200 = vdwg.mxu0
  %v201 = vpack.c.bf16 %v142, %v139
  %v202 = vpack.c.bf16 %v150, %v147
  %v203 = vpack.c.bf16 %v158, %v155
  %v204 = vpack.c.bf16 %v166, %v163
  %v205 = vpack.c.bf16 %v174, %v171
  %v206 = vpack.c.bf16 %v182, %v179
  %v207 = vpack.c.bf16 %v190, %v187
  %v208 = vpack.c.bf16 %v198, %v195
  %v209 = vld [vmem:[%s2] sm:$0xf]
  %v210 = vld [vmem:[%s2 + $0x4] sm:$0xf]
  %v211 = vld [vmem:[%s2 + $0x8] sm:$0xf]
  %v212 = vld [vmem:[%s2 + $0xc] sm:$0xf]
  %v213 = vld [vmem:[%s2 + $0x10] sm:$0xf]
  %v214 = vld [vmem:[%s2 + $0x14] sm:$0xf]
  %v221 = vunpack.c.l.b16 %v209
  %v222 = vunpack.c.l.b16 %v210
  %v223 = vunpack.c.l.b16 %v211
  %v224 = vunpack.c.l.b16 %v212
  %v225 = vunpack.c.l.b16 %v213
  %v226 = vunpack.c.l.b16 %v214
  %v227 = vpack.c.b16 %v222, %v221
  %v228 = vpack.c.b16 %v224, %v223
  %v229 = vpack.c.b16 %v226, %v225
  %v231 = vsel %vm79, %v227, 0
  %v234 = vsel %vm79, %v228, 0
  %v237 = vsel %vm79, %v229, 0
  %239 = vmatprep.subr.bf16.mxu0 0
  %240 = vmatpush1.bf16.msra.mxu0 %v201
  %241 = vmatprep.subr.bf16.mxu0 0
  %242 = vmatpush1.bf16.msra.mxu0 0
  %243 = vmatprep.subr.bf16.mxu0 0
  %244 = vmatpush1.bf16.msra.mxu0 0
  %245 = vmatprep.subr.bf16.mxu0 0
  %246 = vmatpush1.bf16.msra.mxu0 0
  %247 = vmatprep.subr.bf16.mxu0 0
  %248 = vmatpush1.bf16.msra.mxu0 0
  %249 = vmatprep.subr.bf16.mxu0 0
  %250 = vmatpush1.bf16.msra.mxu0 0
  %251 = vmatprep.subr.bf16.mxu0 0
  %252 = vmatpush1.bf16.msra.mxu0 0
  %253 = vmatprep.subr.bf16.mxu0 0
  %254 = vmatpush1.bf16.msra.mxu0 0
  %255 = vmatprep.subr.bf16.mxu0 0
  %256 = vmatpush1.bf16.msra.mxu0 0
  %257 = vmatprep.subr.bf16.mxu0 0
  %258 = vmatpush1.bf16.msra.mxu0 0
  %259 = vmatprep.subr.bf16.mxu0 0
  %260 = vmatpush1.bf16.msra.mxu0 0
  %261 = vmatprep.subr.bf16.mxu0 0
  %262 = vmatpush1.bf16.msra.mxu0 0
  %263 = vmatprep.subr.bf16.mxu0 0
  %264 = vmatpush1.bf16.msra.mxu0 0
  %265 = vmatprep.subr.bf16.mxu0 0
  %266 = vmatpush1.bf16.msra.mxu0 0
  %267 = vmatprep.subr.bf16.mxu0 0
  %268 = vmatpush1.bf16.msra.mxu0 0
  %269 = vmatprep.subr.bf16.mxu0 0
  %270 = vmatpush1.bf16.msra.mxu0 0
  %271 = vmatprep.mubr.bf16.mxu0 0
  %272 = vmatmul.mubr.bf16.gmra.mrb[0].mxu0 %v231
  %v273 = vpop.f32.mrb[0].mxu0
  %v274 = vadd.f32 0.0, %v273
  %v275 = vpop.f32.mrb[0].mxu0
  %v276 = vpop.f32.mrb[0].mxu0
  %v277 = vadd.f32 0.0, %v276
  %v278 = vpop.f32.mrb[0].mxu0
  %279 = vmatprep.mubr.bf16.mxu0 0
  %280 = vmatmul.mubr.bf16.gmra.mrb[0].mxu0 %v234
  %v281 = vpop.f32.mrb[0].mxu0
  %v282 = vadd.f32 0.0, %v281
  %v283 = vpop.f32.mrb[0].mxu0
  %v284 = vpop.f32.mrb[0].mxu0
  %v285 = vadd.f32 0.0, %v284
  %v286 = vpop.f32.mrb[0].mxu0
  %287 = vmatprep.mubr.bf16.mxu0 0
  %288 = vmatmul.mubr.bf16.gmra.mrb[0].mxu0 %v237
  %v289 = vpop.f32.mrb[0].mxu0
  %v290 = vadd.f32 0.0, %v289
  %v291 = vpop.f32.mrb[0].mxu0
  %v292 = vpop.f32.mrb[0].mxu0
  %v293 = vadd.f32 0.0, %v292
  %v294 = vpop.f32.mrb[0].mxu0
  %295 = vdwg.mxu0
  %v296 = vpack.c.bf16 %v277, %v274
  %v297 = vpack.c.bf16 %v285, %v282
  %v298 = vpack.c.bf16 %v293, %v290
  %v302 = vunpack.c.l.b16 %v296
  %v303 = vunpack.c.h.b16 %v296
  %v304 = vunpack.c.l.b16 %v297
  %v305 = vunpack.c.h.b16 %v297
  %v306 = vunpack.c.l.b16 %v298
  %v307 = vunpack.c.h.b16 %v298
  %v308 = vpack.c.b16 %v302, %v302
  %v309 = vpack.c.b16 %v303, %v303
  %v310 = vpack.c.b16 %v304, %v304
  %v311 = vpack.c.b16 %v305, %v305
  %v312 = vpack.c.b16 %v306, %v306
  %v313 = vpack.c.b16 %v307, %v307
  %vm320 = vcmask 388096
  %321 = vst.msk [vmem:[%s3] sm:$0xf] %vm320, %v308
  %322 = vst.msk [vmem:[%s3 + $0x4] sm:$0xf] %vm320, %v309
  %323 = vst.msk [vmem:[%s3 + $0x8] sm:$0xf] %vm320, %v310
  %324 = vst.msk [vmem:[%s3 + $0xc] sm:$0xf] %vm320, %v311
  %325 = vst.msk [vmem:[%s3 + $0x10] sm:$0xf] %vm320, %v312
  %326 = vst.msk [vmem:[%s3 + $0x14] sm:$0xf] %vm320, %v313
  %327 = vmatprep.subr.bf16.mxu0 0
  %328 = vmatpush1.bf16.msra.mxu0 %v202
  %329 = vmatprep.subr.bf16.mxu0 0
  %330 = vmatpush1.bf16.msra.mxu0 0
  %331 = vmatprep.subr.bf16.mxu0 0
  %332 = vmatpush1.bf16.msra.mxu0 0
  %333 = vmatprep.subr.bf16.mxu0 0
  %334 = vmatpush1.bf16.msra.mxu0 0
  %335 = vmatprep.subr.bf16.mxu0 0
  %336 = vmatpush1.bf16.msra.mxu0 0
  %337 = vmatprep.subr.bf16.mxu0 0
  %338 = vmatpush1.bf16.msra.mxu0 0
  %339 = vmatprep.subr.bf16.mxu0 0
  %340 = vmatpush1.bf16.msra.mxu0 0
  %341 = vmatprep.subr.bf16.mxu0 0
  %342 = vmatpush1.bf16.msra.mxu0 0
  %343 = vmatprep.subr.bf16.mxu0 0
  %344 = vmatpush1.bf16.msra.mxu0 0
  %345 = vmatprep.subr.bf16.mxu0 0
  %346 = vmatpush1.bf16.msra.mxu0 0
  %347 = vmatprep.subr.bf16.mxu0 0
  %348 = vmatpush1.bf16.msra.mxu0 0
  %349 = vmatprep.subr.bf16.mxu0 0
  %350 = vmatpush1.bf16.msra.mxu0 0
  %351 = vmatprep.subr.bf16.mxu0 0
  %352 = vmatpush1.bf16.msra.mxu0 0
  %353 = vmatprep.subr.bf16.mxu0 0
  %354 = vmatpush1.bf16.msra.mxu0 0
  %355 = vmatprep.subr.bf16.mxu0 0
  %356 = vmatpush1.bf16.msra.mxu0 0
  %357 = vmatprep.subr.bf16.mxu0 0
  %358 = vmatpush1.bf16.msra.mxu0 0
  %359 = vmatprep.mubr.bf16.mxu0 0
  %360 = vmatmul.mubr.bf16.gmra.mrb[0].mxu0 %v231
  %v361 = vpop.f32.mrb[0].mxu0
  %v362 = vadd.f32 0.0, %v361
  %v363 = vpop.f32.mrb[0].mxu0
  %v364 = vpop.f32.mrb[0].mxu0
  %v365 = vadd.f32 0.0, %v364
  %v366 = vpop.f32.mrb[0].mxu0
  %367 = vmatprep.mubr.bf16.mxu0 0
  %368 = vmatmul.mubr.bf16.gmra.mrb[0].mxu0 %v234
  %v369 = vpop.f32.mrb[0].mxu0
  %v370 = vadd.f32 0.0, %v369
  %v371 = vpop.f32.mrb[0].mxu0
  %v372 = vpop.f32.mrb[0].mxu0
  %v373 = vadd.f32 0.0, %v372
  %v374 = vpop.f32.mrb[0].mxu0
  %375 = vmatprep.mubr.bf16.mxu0 0
  %376 = vmatmul.mubr.bf16.gmra.mrb[0].mxu0 %v237
  %v377 = vpop.f32.mrb[0].mxu0
  %v378 = vadd.f32 0.0, %v377
  %v379 = vpop.f32.mrb[0].mxu0
  %v380 = vpop.f32.mrb[0].mxu0
  %v381 = vadd.f32 0.0, %v380
  %v382 = vpop.f32.mrb[0].mxu0
  %383 = vdwg.mxu0
  %v384 = vpack.c.bf16 %v365, %v362
  %v385 = vpack.c.bf16 %v373, %v370
  %v386 = vpack.c.bf16 %v381, %v378
  %v390 = vunpack.c.l.b16 %v384
  %v391 = vunpack.c.h.b16 %v384
  %v392 = vunpack.c.l.b16 %v385
  %v393 = vunpack.c.h.b16 %v385
  %v394 = vunpack.c.l.b16 %v386
  %v395 = vunpack.c.h.b16 %v386
  %v396 = vpack.c.b16 %v390, %v390
  %v397 = vpack.c.b16 %v391, %v391
  %v398 = vpack.c.b16 %v392, %v392
  %v399 = vpack.c.b16 %v393, %v393
  %v400 = vpack.c.b16 %v394, %v394
  %v401 = vpack.c.b16 %v395, %v395
  %s408 = scalar_lea.vmem %s3, 24
  %409 = vst.msk [vmem:[%s408] sm:$0xf] %vm320, %v396
  %410 = vst.msk [vmem:[%s408 + $0x4] sm:$0xf] %vm320, %v397
  %411 = vst.msk [vmem:[%s408 + $0x8] sm:$0xf] %vm320, %v398
  %412 = vst.msk [vmem:[%s408 + $0xc] sm:$0xf] %vm320, %v399
  %413 = vst.msk [vmem:[%s408 + $0x10] sm:$0xf] %vm320, %v400
  %414 = vst.msk [vmem:[%s408 + $0x14] sm:$0xf] %vm320, %v401
  %415 = vmatprep.subr.bf16.mxu0 0
  %416 = vmatpush1.bf16.msra.mxu0 %v203
  %417 = vmatprep.subr.bf16.mxu0 0
  %418 = vmatpush1.bf16.msra.mxu0 0
  %419 = vmatprep.subr.bf16.mxu0 0
  %420 = vmatpush1.bf16.msra.mxu0 0
  %421 = vmatprep.subr.bf16.mxu0 0
  %422 = vmatpush1.bf16.msra.mxu0 0
  %423 = vmatprep.subr.bf16.mxu0 0
  %424 = vmatpush1.bf16.msra.mxu0 0
  %425 = vmatprep.subr.bf16.mxu0 0
  %426 = vmatpush1.bf16.msra.mxu0 0
  %427 = vmatprep.subr.bf16.mxu0 0
  %428 = vmatpush1.bf16.msra.mxu0 0
  %429 = vmatprep.subr.bf16.mxu0 0
  %430 = vmatpush1.bf16.msra.mxu0 0
  %431 = vmatprep.subr.bf16.mxu0 0
  %432 = vmatpush1.bf16.msra.mxu0 0
  %433 = vmatprep.subr.bf16.mxu0 0
  %434 = vmatpush1.bf16.msra.mxu0 0
  %435 = vmatprep.subr.bf16.mxu0 0
  %436 = vmatpush1.bf16.msra.mxu0 0
  %437 = vmatprep.subr.bf16.mxu0 0
  %438 = vmatpush1.bf16.msra.mxu0 0
  %439 = vmatprep.subr.bf16.mxu0 0
  %440 = vmatpush1.bf16.msra.mxu0 0
  %441 = vmatprep.subr.bf16.mxu0 0
  %442 = vmatpush1.bf16.msra.mxu0 0
  %443 = vmatprep.subr.bf16.mxu0 0
  %444 = vmatpush1.bf16.msra.mxu0 0
  %445 = vmatprep.subr.bf16.mxu0 0
  %446 = vmatpush1.bf16.msra.mxu0 0
  %447 = vmatprep.mubr.bf16.mxu0 0
  %448 = vmatmul.mubr.bf16.gmra.mrb[0].mxu0 %v231
  %v449 = vpop.f32.mrb[0].mxu0
  %v450 = vadd.f32 0.0, %v449
  %v451 = vpop.f32.mrb[0].mxu0
  %v452 = vpop.f32.mrb[0].mxu0
  %v453 = vadd.f32 0.0, %v452
  %v454 = vpop.f32.mrb[0].mxu0
  %455 = vmatprep.mubr.bf16.mxu0 0
  %456 = vmatmul.mubr.bf16.gmra.mrb[0].mxu0 %v234
  %v457 = vpop.f32.mrb[0].mxu0
  %v458 = vadd.f32 0.0, %v457
  %v459 = vpop.f32.mrb[0].mxu0
  %v460 = vpop.f32.mrb[0].mxu0
  %v461 = vadd.f32 0.0, %v460
  %v462 = vpop.f32.mrb[0].mxu0
  %463 = vmatprep.mubr.bf16.mxu0 0
  %464 = vmatmul.mubr.bf16.gmra.mrb[0].mxu0 %v237
  %v465 = vpop.f32.mrb[0].mxu0
  %v466 = vadd.f32 0.0, %v465
  %v467 = vpop.f32.mrb[0].mxu0
  %v468 = vpop.f32.mrb[0].mxu0
  %v469 = vadd.f32 0.0, %v468
  %v470 = vpop.f32.mrb[0].mxu0
  %471 = vdwg.mxu0
  %v472 = vpack.c.bf16 %v453, %v450
  %v473 = vpack.c.bf16 %v461, %v458
  %v474 = vpack.c.bf16 %v469, %v466
  %v478 = vunpack.c.l.b16 %v472
  %v479 = vunpack.c.h.b16 %v472
  %v480 = vunpack.c.l.b16 %v473
  %v481 = vunpack.c.h.b16 %v473
  %v482 = vunpack.c.l.b16 %v474
  %v483 = vunpack.c.h.b16 %v474
  %v484 = vpack.c.b16 %v478, %v478
  %v485 = vpack.c.b16 %v479, %v479
  %v486 = vpack.c.b16 %v480, %v480
  %v487 = vpack.c.b16 %v481, %v481
  %v488 = vpack.c.b16 %v482, %v482
  %v489 = vpack.c.b16 %v483, %v483
  %s496 = scalar_lea.vmem %s3, 48
  %497 = vst.msk [vmem:[%s496] sm:$0xf] %vm320, %v484
  %498 = vst.msk [vmem:[%s496 + $0x4] sm:$0xf] %vm320, %v485
  %499 = vst.msk [vmem:[%s496 + $0x8] sm:$0xf] %vm320, %v486
  %500 = vst.msk [vmem:[%s496 + $0xc] sm:$0xf] %vm320, %v487
  %501 = vst.msk [vmem:[%s496 + $0x10] sm:$0xf] %vm320, %v488
  %502 = vst.msk [vmem:[%s496 + $0x14] sm:$0xf] %vm320, %v489
  %503 = vmatprep.subr.bf16.mxu0 0
  %504 = vmatpush1.bf16.msra.mxu0 %v204
  %505 = vmatprep.subr.bf16.mxu0 0
  %506 = vmatpush1.bf16.msra.mxu0 0
  %507 = vmatprep.subr.bf16.mxu0 0
  %508 = vmatpush1.bf16.msra.mxu0 0
  %509 = vmatprep.subr.bf16.mxu0 0
  %510 = vmatpush1.bf16.msra.mxu0 0
  %511 = vmatprep.subr.bf16.mxu0 0
  %512 = vmatpush1.bf16.msra.mxu0 0
  %513 = vmatprep.subr.bf16.mxu0 0
  %514 = vmatpush1.bf16.msra.mxu0 0
  %515 = vmatprep.subr.bf16.mxu0 0
  %516 = vmatpush1.bf16.msra.mxu0 0
  %517 = vmatprep.subr.bf16.mxu0 0
  %518 = vmatpush1.bf16.msra.mxu0 0
  %519 = vmatprep.subr.bf16.mxu0 0
  %520 = vmatpush1.bf16.msra.mxu0 0
  %521 = vmatprep.subr.bf16.mxu0 0
  %522 = vmatpush1.bf16.msra.mxu0 0
  %523 = vmatprep.subr.bf16.mxu0 0
  %524 = vmatpush1.bf16.msra.mxu0 0
  %525 = vmatprep.subr.bf16.mxu0 0
  %526 = vmatpush1.bf16.msra.mxu0 0
  %527 = vmatprep.subr.bf16.mxu0 0
  %528 = vmatpush1.bf16.msra.mxu0 0
  %529 = vmatprep.subr.bf16.mxu0 0
  %530 = vmatpush1.bf16.msra.mxu0 0
  %531 = vmatprep.subr.bf16.mxu0 0
  %532 = vmatpush1.bf16.msra.mxu0 0
  %533 = vmatprep.subr.bf16.mxu0 0
  %534 = vmatpush1.bf16.msra.mxu0 0
  %535 = vmatprep.mubr.bf16.mxu0 0
  %536 = vmatmul.mubr.bf16.gmra.mrb[0].mxu0 %v231
  %v537 = vpop.f32.mrb[0].mxu0
  %v538 = vadd.f32 0.0, %v537
  %v539 = vpop.f32.mrb[0].mxu0
  %v540 = vpop.f32.mrb[0].mxu0
  %v541 = vadd.f32 0.0, %v540
  %v542 = vpop.f32.mrb[0].mxu0
  %543 = vmatprep.mubr.bf16.mxu0 0
  %544 = vmatmul.mubr.bf16.gmra.mrb[0].mxu0 %v234
  %v545 = vpop.f32.mrb[0].mxu0
  %v546 = vadd.f32 0.0, %v545
  %v547 = vpop.f32.mrb[0].mxu0
  %v548 = vpop.f32.mrb[0].mxu0
  %v549 = vadd.f32 0.0, %v548
  %v550 = vpop.f32.mrb[0].mxu0
  %551 = vmatprep.mubr.bf16.mxu0 0
  %552 = vmatmul.mubr.bf16.gmra.mrb[0].mxu0 %v237
  %v553 = vpop.f32.mrb[0].mxu0
  %v554 = vadd.f32 0.0, %v553
  %v555 = vpop.f32.mrb[0].mxu0
  %v556 = vpop.f32.mrb[0].mxu0
  %v557 = vadd.f32 0.0, %v556
  %v558 = vpop.f32.mrb[0].mxu0
  %559 = vdwg.mxu0
  %v560 = vpack.c.bf16 %v541, %v538
  %v561 = vpack.c.bf16 %v549, %v546
  %v562 = vpack.c.bf16 %v557, %v554
  %v566 = vunpack.c.l.b16 %v560
  %v567 = vunpack.c.h.b16 %v560
  %v568 = vunpack.c.l.b16 %v561
  %v569 = vunpack.c.h.b16 %v561
  %v570 = vunpack.c.l.b16 %v562
  %v571 = vunpack.c.h.b16 %v562
  %v572 = vpack.c.b16 %v566, %v566
  %v573 = vpack.c.b16 %v567, %v567
  %v574 = vpack.c.b16 %v568, %v568
  %v575 = vpack.c.b16 %v569, %v569
  %v576 = vpack.c.b16 %v570, %v570
  %v577 = vpack.c.b16 %v571, %v571
  %s584 = scalar_lea.vmem %s3, 72
  %585 = vst.msk [vmem:[%s584] sm:$0xf] %vm320, %v572
  %586 = vst.msk [vmem:[%s584 + $0x4] sm:$0xf] %vm320, %v573
  %587 = vst.msk [vmem:[%s584 + $0x8] sm:$0xf] %vm320, %v574
  %588 = vst.msk [vmem:[%s584 + $0xc] sm:$0xf] %vm320, %v575
  %589 = vst.msk [vmem:[%s584 + $0x10] sm:$0xf] %vm320, %v576
  %590 = vst.msk [vmem:[%s584 + $0x14] sm:$0xf] %vm320, %v577
  %591 = vmatprep.subr.bf16.mxu0 0
  %592 = vmatpush1.bf16.msra.mxu0 %v205
  %593 = vmatprep.subr.bf16.mxu0 0
  %594 = vmatpush1.bf16.msra.mxu0 0
  %595 = vmatprep.subr.bf16.mxu0 0
  %596 = vmatpush1.bf16.msra.mxu0 0
  %597 = vmatprep.subr.bf16.mxu0 0
  %598 = vmatpush1.bf16.msra.mxu0 0
  %599 = vmatprep.subr.bf16.mxu0 0
  %600 = vmatpush1.bf16.msra.mxu0 0
  %601 = vmatprep.subr.bf16.mxu0 0
  %602 = vmatpush1.bf16.msra.mxu0 0
  %603 = vmatprep.subr.bf16.mxu0 0
  %604 = vmatpush1.bf16.msra.mxu0 0
  %605 = vmatprep.subr.bf16.mxu0 0
  %606 = vmatpush1.bf16.msra.mxu0 0
  %607 = vmatprep.subr.bf16.mxu0 0
  %608 = vmatpush1.bf16.msra.mxu0 0
  %609 = vmatprep.subr.bf16.mxu0 0
  %610 = vmatpush1.bf16.msra.mxu0 0
  %611 = vmatprep.subr.bf16.mxu0 0
  %612 = vmatpush1.bf16.msra.mxu0 0
  %613 = vmatprep.subr.bf16.mxu0 0
  %614 = vmatpush1.bf16.msra.mxu0 0
  %615 = vmatprep.subr.bf16.mxu0 0
  %616 = vmatpush1.bf16.msra.mxu0 0
  %617 = vmatprep.subr.bf16.mxu0 0
  %618 = vmatpush1.bf16.msra.mxu0 0
  %619 = vmatprep.subr.bf16.mxu0 0
  %620 = vmatpush1.bf16.msra.mxu0 0
  %621 = vmatprep.subr.bf16.mxu0 0
  %622 = vmatpush1.bf16.msra.mxu0 0
  %623 = vmatprep.mubr.bf16.mxu0 0
  %624 = vmatmul.mubr.bf16.gmra.mrb[0].mxu0 %v231
  %v625 = vpop.f32.mrb[0].mxu0
  %v626 = vadd.f32 0.0, %v625
  %v627 = vpop.f32.mrb[0].mxu0
  %v628 = vpop.f32.mrb[0].mxu0
  %v629 = vadd.f32 0.0, %v628
  %v630 = vpop.f32.mrb[0].mxu0
  %631 = vmatprep.mubr.bf16.mxu0 0
  %632 = vmatmul.mubr.bf16.gmra.mrb[0].mxu0 %v234
  %v633 = vpop.f32.mrb[0].mxu0
  %v634 = vadd.f32 0.0, %v633
  %v635 = vpop.f32.mrb[0].mxu0
  %v636 = vpop.f32.mrb[0].mxu0
  %v637 = vadd.f32 0.0, %v636
  %v638 = vpop.f32.mrb[0].mxu0
  %639 = vmatprep.mubr.bf16.mxu0 0
  %640 = vmatmul.mubr.bf16.gmra.mrb[0].mxu0 %v237
  %v641 = vpop.f32.mrb[0].mxu0
  %v642 = vadd.f32 0.0, %v641
  %v643 = vpop.f32.mrb[0].mxu0
  %v644 = vpop.f32.mrb[0].mxu0
  %v645 = vadd.f32 0.0, %v644
  %v646 = vpop.f32.mrb[0].mxu0
  %647 = vdwg.mxu0
  %v648 = vpack.c.bf16 %v629, %v626
  %v649 = vpack.c.bf16 %v637, %v634
  %v650 = vpack.c.bf16 %v645, %v642
  %v654 = vunpack.c.l.b16 %v648
  %v655 = vunpack.c.h.b16 %v648
  %v656 = vunpack.c.l.b16 %v649
  %v657 = vunpack.c.h.b16 %v649
  %v658 = vunpack.c.l.b16 %v650
  %v659 = vunpack.c.h.b16 %v650
  %v660 = vpack.c.b16 %v654, %v654
  %v661 = vpack.c.b16 %v655, %v655
  %v662 = vpack.c.b16 %v656, %v656
  %v663 = vpack.c.b16 %v657, %v657
  %v664 = vpack.c.b16 %v658, %v658
  %v665 = vpack.c.b16 %v659, %v659
  %s672 = scalar_lea.vmem %s3, 96
  %673 = vst.msk [vmem:[%s672] sm:$0xf] %vm320, %v660
  %674 = vst.msk [vmem:[%s672 + $0x4] sm:$0xf] %vm320, %v661
  %675 = vst.msk [vmem:[%s672 + $0x8] sm:$0xf] %vm320, %v662
  %676 = vst.msk [vmem:[%s672 + $0xc] sm:$0xf] %vm320, %v663
  %677 = vst.msk [vmem:[%s672 + $0x10] sm:$0xf] %vm320, %v664
  %678 = vst.msk [vmem:[%s672 + $0x14] sm:$0xf] %vm320, %v665
  %679 = vmatprep.subr.bf16.mxu0 0
  %680 = vmatpush1.bf16.msra.mxu0 %v206
  %681 = vmatprep.subr.bf16.mxu0 0
  %682 = vmatpush1.bf16.msra.mxu0 0
  %683 = vmatprep.subr.bf16.mxu0 0
  %684 = vmatpush1.bf16.msra.mxu0 0
  %685 = vmatprep.subr.bf16.mxu0 0
  %686 = vmatpush1.bf16.msra.mxu0 0
  %687 = vmatprep.subr.bf16.mxu0 0
  %688 = vmatpush1.bf16.msra.mxu0 0
  %689 = vmatprep.subr.bf16.mxu0 0
  %690 = vmatpush1.bf16.msra.mxu0 0
  %691 = vmatprep.subr.bf16.mxu0 0
  %692 = vmatpush1.bf16.msra.mxu0 0
  %693 = vmatprep.subr.bf16.mxu0 0
  %694 = vmatpush1.bf16.msra.mxu0 0
  %695 = vmatprep.subr.bf16.mxu0 0
  %696 = vmatpush1.bf16.msra.mxu0 0
  %697 = vmatprep.subr.bf16.mxu0 0
  %698 = vmatpush1.bf16.msra.mxu0 0
  %699 = vmatprep.subr.bf16.mxu0 0
  %700 = vmatpush1.bf16.msra.mxu0 0
  %701 = vmatprep.subr.bf16.mxu0 0
  %702 = vmatpush1.bf16.msra.mxu0 0
  %703 = vmatprep.subr.bf16.mxu0 0
  %704 = vmatpush1.bf16.msra.mxu0 0
  %705 = vmatprep.subr.bf16.mxu0 0
  %706 = vmatpush1.bf16.msra.mxu0 0
  %707 = vmatprep.subr.bf16.mxu0 0
  %708 = vmatpush1.bf16.msra.mxu0 0
  %709 = vmatprep.subr.bf16.mxu0 0
  %710 = vmatpush1.bf16.msra.mxu0 0
  %711 = vmatprep.mubr.bf16.mxu0 0
  %712 = vmatmul.mubr.bf16.gmra.mrb[0].mxu0 %v231
  %v713 = vpop.f32.mrb[0].mxu0
  %v714 = vadd.f32 0.0, %v713
  %v715 = vpop.f32.mrb[0].mxu0
  %v716 = vpop.f32.mrb[0].mxu0
  %v717 = vadd.f32 0.0, %v716
  %v718 = vpop.f32.mrb[0].mxu0
  %719 = vmatprep.mubr.bf16.mxu0 0
  %720 = vmatmul.mubr.bf16.gmra.mrb[0].mxu0 %v234
  %v721 = vpop.f32.mrb[0].mxu0
  %v722 = vadd.f32 0.0, %v721
  %v723 = vpop.f32.mrb[0].mxu0
  %v724 = vpop.f32.mrb[0].mxu0
  %v725 = vadd.f32 0.0, %v724
  %v726 = vpop.f32.mrb[0].mxu0
  %727 = vmatprep.mubr.bf16.mxu0 0
  %728 = vmatmul.mubr.bf16.gmra.mrb[0].mxu0 %v237
  %v729 = vpop.f32.mrb[0].mxu0
  %v730 = vadd.f32 0.0, %v729
  %v731 = vpop.f32.mrb[0].mxu0
  %v732 = vpop.f32.mrb[0].mxu0
  %v733 = vadd.f32 0.0, %v732
  %v734 = vpop.f32.mrb[0].mxu0
  %735 = vdwg.mxu0
  %v736 = vpack.c.bf16 %v717, %v714
  %v737 = vpack.c.bf16 %v725, %v722
  %v738 = vpack.c.bf16 %v733, %v730
  %v742 = vunpack.c.l.b16 %v736
  %v743 = vunpack.c.h.b16 %v736
  %v744 = vunpack.c.l.b16 %v737
  %v745 = vunpack.c.h.b16 %v737
  %v746 = vunpack.c.l.b16 %v738
  %v747 = vunpack.c.h.b16 %v738
  %v748 = vpack.c.b16 %v742, %v742
  %v749 = vpack.c.b16 %v743, %v743
  %v750 = vpack.c.b16 %v744, %v744
  %v751 = vpack.c.b16 %v745, %v745
  %v752 = vpack.c.b16 %v746, %v746
  %v753 = vpack.c.b16 %v747, %v747
  %s760 = scalar_lea.vmem %s3, 120
  %761 = vst.msk [vmem:[%s760] sm:$0xf] %vm320, %v748
  %762 = vst.msk [vmem:[%s760 + $0x4] sm:$0xf] %vm320, %v749
  %763 = vst.msk [vmem:[%s760 + $0x8] sm:$0xf] %vm320, %v750
  %764 = vst.msk [vmem:[%s760 + $0xc] sm:$0xf] %vm320, %v751
  %765 = vst.msk [vmem:[%s760 + $0x10] sm:$0xf] %vm320, %v752
  %766 = vst.msk [vmem:[%s760 + $0x14] sm:$0xf] %vm320, %v753
  %767 = vmatprep.subr.bf16.mxu0 0
  %768 = vmatpush1.bf16.msra.mxu0 %v207
  %769 = vmatprep.subr.bf16.mxu0 0
  %770 = vmatpush1.bf16.msra.mxu0 0
  %771 = vmatprep.subr.bf16.mxu0 0
  %772 = vmatpush1.bf16.msra.mxu0 0
  %773 = vmatprep.subr.bf16.mxu0 0
  %774 = vmatpush1.bf16.msra.mxu0 0
  %775 = vmatprep.subr.bf16.mxu0 0
  %776 = vmatpush1.bf16.msra.mxu0 0
  %777 = vmatprep.subr.bf16.mxu0 0
  %778 = vmatpush1.bf16.msra.mxu0 0
  %779 = vmatprep.subr.bf16.mxu0 0
  %780 = vmatpush1.bf16.msra.mxu0 0
  %781 = vmatprep.subr.bf16.mxu0 0
  %782 = vmatpush1.bf16.msra.mxu0 0
  %783 = vmatprep.subr.bf16.mxu0 0
  %784 = vmatpush1.bf16.msra.mxu0 0
  %785 = vmatprep.subr.bf16.mxu0 0
  %786 = vmatpush1.bf16.msra.mxu0 0
  %787 = vmatprep.subr.bf16.mxu0 0
  %788 = vmatpush1.bf16.msra.mxu0 0
  %789 = vmatprep.subr.bf16.mxu0 0
  %790 = vmatpush1.bf16.msra.mxu0 0
  %791 = vmatprep.subr.bf16.mxu0 0
  %792 = vmatpush1.bf16.msra.mxu0 0
  %793 = vmatprep.subr.bf16.mxu0 0
  %794 = vmatpush1.bf16.msra.mxu0 0
  %795 = vmatprep.subr.bf16.mxu0 0
  %796 = vmatpush1.bf16.msra.mxu0 0
  %797 = vmatprep.subr.bf16.mxu0 0
  %798 = vmatpush1.bf16.msra.mxu0 0
  %799 = vmatprep.mubr.bf16.mxu0 0
  %800 = vmatmul.mubr.bf16.gmra.mrb[0].mxu0 %v231
  %v801 = vpop.f32.mrb[0].mxu0
  %v802 = vadd.f32 0.0, %v801
  %v803 = vpop.f32.mrb[0].mxu0
  %v804 = vpop.f32.mrb[0].mxu0
  %v805 = vadd.f32 0.0, %v804
  %v806 = vpop.f32.mrb[0].mxu0
  %807 = vmatprep.mubr.bf16.mxu0 0
  %808 = vmatmul.mubr.bf16.gmra.mrb[0].mxu0 %v234
  %v809 = vpop.f32.mrb[0].mxu0
  %v810 = vadd.f32 0.0, %v809
  %v811 = vpop.f32.mrb[0].mxu0
  %v812 = vpop.f32.mrb[0].mxu0
  %v813 = vadd.f32 0.0, %v812
  %v814 = vpop.f32.mrb[0].mxu0
  %815 = vmatprep.mubr.bf16.mxu0 0
  %816 = vmatmul.mubr.bf16.gmra.mrb[0].mxu0 %v237
  %v817 = vpop.f32.mrb[0].mxu0
  %v818 = vadd.f32 0.0, %v817
  %v819 = vpop.f32.mrb[0].mxu0
  %v820 = vpop.f32.mrb[0].mxu0
  %v821 = vadd.f32 0.0, %v820
  %v822 = vpop.f32.mrb[0].mxu0
  %823 = vdwg.mxu0
  %v824 = vpack.c.bf16 %v805, %v802
  %v825 = vpack.c.bf16 %v813, %v810
  %v826 = vpack.c.bf16 %v821, %v818
  %v830 = vunpack.c.l.b16 %v824
  %v831 = vunpack.c.h.b16 %v824
  %v832 = vunpack.c.l.b16 %v825
  %v833 = vunpack.c.h.b16 %v825
  %v834 = vunpack.c.l.b16 %v826
  %v835 = vunpack.c.h.b16 %v826
  %v836 = vpack.c.b16 %v830, %v830
  %v837 = vpack.c.b16 %v831, %v831
  %v838 = vpack.c.b16 %v832, %v832
  %v839 = vpack.c.b16 %v833, %v833
  %v840 = vpack.c.b16 %v834, %v834
  %v841 = vpack.c.b16 %v835, %v835
  %s848 = scalar_lea.vmem %s3, 144
  %849 = vst.msk [vmem:[%s848] sm:$0xf] %vm320, %v836
  %850 = vst.msk [vmem:[%s848 + $0x4] sm:$0xf] %vm320, %v837
  %851 = vst.msk [vmem:[%s848 + $0x8] sm:$0xf] %vm320, %v838
  %852 = vst.msk [vmem:[%s848 + $0xc] sm:$0xf] %vm320, %v839
  %853 = vst.msk [vmem:[%s848 + $0x10] sm:$0xf] %vm320, %v840
  %854 = vst.msk [vmem:[%s848 + $0x14] sm:$0xf] %vm320, %v841
  %855 = vmatprep.subr.bf16.mxu0 0
  %856 = vmatpush1.bf16.msra.mxu0 %v208
  %857 = vmatprep.subr.bf16.mxu0 0
  %858 = vmatpush1.bf16.msra.mxu0 0
  %859 = vmatprep.subr.bf16.mxu0 0
  %860 = vmatpush1.bf16.msra.mxu0 0
  %861 = vmatprep.subr.bf16.mxu0 0
  %862 = vmatpush1.bf16.msra.mxu0 0
  %863 = vmatprep.subr.bf16.mxu0 0
  %864 = vmatpush1.bf16.msra.mxu0 0
  %865 = vmatprep.subr.bf16.mxu0 0
  %866 = vmatpush1.bf16.msra.mxu0 0
  %867 = vmatprep.subr.bf16.mxu0 0
  %868 = vmatpush1.bf16.msra.mxu0 0
  %869 = vmatprep.subr.bf16.mxu0 0
  %870 = vmatpush1.bf16.msra.mxu0 0
  %871 = vmatprep.subr.bf16.mxu0 0
  %872 = vmatpush1.bf16.msra.mxu0 0
  %873 = vmatprep.subr.bf16.mxu0 0
  %874 = vmatpush1.bf16.msra.mxu0 0
  %875 = vmatprep.subr.bf16.mxu0 0
  %876 = vmatpush1.bf16.msra.mxu0 0
  %877 = vmatprep.subr.bf16.mxu0 0
  %878 = vmatpush1.bf16.msra.mxu0 0
  %879 = vmatprep.subr.bf16.mxu0 0
  %880 = vmatpush1.bf16.msra.mxu0 0
  %881 = vmatprep.subr.bf16.mxu0 0
  %882 = vmatpush1.bf16.msra.mxu0 0
  %883 = vmatprep.subr.bf16.mxu0 0
  %884 = vmatpush1.bf16.msra.mxu0 0
  %885 = vmatprep.subr.bf16.mxu0 0
  %886 = vmatpush1.bf16.msra.mxu0 0
  %887 = vmatprep.mubr.bf16.mxu0 0
  %888 = vmatmul.mubr.bf16.gmra.mrb[0].mxu0 %v231
  %v889 = vpop.f32.mrb[0].mxu0
  %v890 = vadd.f32 0.0, %v889
  %v891 = vpop.f32.mrb[0].mxu0
  %v892 = vpop.f32.mrb[0].mxu0
  %v893 = vadd.f32 0.0, %v892
  %v894 = vpop.f32.mrb[0].mxu0
  %895 = vmatprep.mubr.bf16.mxu0 0
  %896 = vmatmul.mubr.bf16.gmra.mrb[0].mxu0 %v234
  %v897 = vpop.f32.mrb[0].mxu0
  %v898 = vadd.f32 0.0, %v897
  %v899 = vpop.f32.mrb[0].mxu0
  %v900 = vpop.f32.mrb[0].mxu0
  %v901 = vadd.f32 0.0, %v900
  %v902 = vpop.f32.mrb[0].mxu0
  %903 = vmatprep.mubr.bf16.mxu0 0
  %904 = vmatmul.mubr.bf16.gmra.mrb[0].mxu0 %v237
  %v905 = vpop.f32.mrb[0].mxu0
  %v906 = vadd.f32 0.0, %v905
  %v907 = vpop.f32.mrb[0].mxu0
  %v908 = vpop.f32.mrb[0].mxu0
  %v909 = vadd.f32 0.0, %v908
  %v910 = vpop.f32.mrb[0].mxu0
  %911 = vdwg.mxu0
  %v912 = vpack.c.bf16 %v893, %v890
  %v913 = vpack.c.bf16 %v901, %v898
  %v914 = vpack.c.bf16 %v909, %v906
  %v918 = vunpack.c.l.b16 %v912
  %v919 = vunpack.c.h.b16 %v912
  %v920 = vunpack.c.l.b16 %v913
  %v921 = vunpack.c.h.b16 %v913
  %v922 = vunpack.c.l.b16 %v914
  %v923 = vunpack.c.h.b16 %v914
  %v924 = vpack.c.b16 %v918, %v918
  %v925 = vpack.c.b16 %v919, %v919
  %v926 = vpack.c.b16 %v920, %v920
  %v927 = vpack.c.b16 %v921, %v921
  %v928 = vpack.c.b16 %v922, %v922
  %v929 = vpack.c.b16 %v923, %v923
  %s936 = scalar_lea.vmem %s3, 168
  %937 = vst.msk [vmem:[%s936] sm:$0xf] %vm320, %v924
  %938 = vst.msk [vmem:[%s936 + $0x4] sm:$0xf] %vm320, %v925
  %939 = vst.msk [vmem:[%s936 + $0x8] sm:$0xf] %vm320, %v926
  %940 = vst.msk [vmem:[%s936 + $0xc] sm:$0xf] %vm320, %v927
  %941 = vst.msk [vmem:[%s936 + $0x10] sm:$0xf] %vm320, %v928
  %942 = vst.msk [vmem:[%s936 + $0x14] sm:$0xf] %vm320, %v929
  // Predicated region
  $region14: #{_transformer_forward.2} parent=0 // pred_check
    _
  $region15: #{_transformer_forward.2} parent=0 // pred_check_branch
    %944 = sbr.rel (0) target = $region17
  $region16: #{_transformer_forward.2} parent=0 // pred_region
    _
  $region17: #{_transformer_forward.2} parent=0 // pred_fallthru
    _
  // Predicated region
  $region18: #{_transformer_forward.2} parent=0 // pred_check
    _
  $region19: #{_transformer_forward.2} parent=0 // pred_check_branch
    %946 = sbr.rel (0) target = $region21
  $region20: #{_transformer_forward.2} parent=0 // pred_region
    _
  $region21: #{_transformer_forward.2} parent=0 // pred_fallthru
    _

// kernel: _transformer_forward.3
$region0: #{_transformer_forward.3}
  #allocation0 [shape = 'u32[]', space=smem, size = 0x4, offset = 0x4, fixed_abs, tag = 'smem constant byte address 0x4 - core index']
  #allocation1 [shape = 'u32[144,128]{1,0:T(1,128)}', space=vmem, size = 0x12000, scoped, tag = 'internal scratch']
  %s0 = inlined_call_operand.vmem [shape: bf16[36,512], index: 0, kind: input, shape index: {}]
  %s1 = inlined_call_operand.vmem [shape: bf16[8,36], index: 1, kind: input, shape index: {}]
  %s2 = inlined_call_operand.vmem [shape: f32[8,1], index: 2, kind: input, shape index: {}]
  %s3 = inlined_call_operand.vmem [shape: f32[2,8], index: 3, kind: input, shape index: {}]
  %s4 = inlined_call_operand.vmem [shape: f32[2,1], index: 4, kind: input, shape index: {}]
  %s5 = inlined_call_operand.vmem [shape: f32[2,256], index: 5, kind: input, shape index: {}]
  %s6 = inlined_call_operand.vmem [shape: f32[2,512], index: 6, kind: output, shape index: {0}]
  %s7 = inlined_call_operand.vmem [shape: f32[2,256], index: 7, kind: output, shape index: {1}]
  %8 = xla_tuple %s6, %s7
  %s9 = sld [smem:[#allocation0]]
  $region42: #{_transformer_forward.3} parent=0
    _
  %s11 = ssub.s32 1, %s9
  %s12 = scalar_select 0, %s11, %s9
  // Predicated region
  $region2: #{_transformer_forward.3} parent=0 // pred_check
    _
  $region3: #{_transformer_forward.3} parent=0 // pred_check_branch
    %14 = sbr.rel (0) target = $region5
  $region4: #{_transformer_forward.3} parent=0 // pred_region
    _
  $region5: #{_transformer_forward.3} parent=0 // pred_fallthru
    _
  // Predicated region
  $region6: #{_transformer_forward.3} parent=0 // pred_check
    _
  $region7: #{_transformer_forward.3} parent=0 // pred_check_branch
    %16 = sbr.rel (0) target = $region9
  $region8: #{_transformer_forward.3} parent=0 // pred_region
    _
  $region9: #{_transformer_forward.3} parent=0 // pred_fallthru
    _
  // Predicated region
  $region10: #{_transformer_forward.3} parent=0 // pred_check
    _
  $region11: #{_transformer_forward.3} parent=0 // pred_check_branch
    %18 = sbr.rel (0) target = $region13
  $region12: #{_transformer_forward.3} parent=0 // pred_region
    _
  $region13: #{_transformer_forward.3} parent=0 // pred_fallthru
    _
  // Predicated region
  $region14: #{_transformer_forward.3} parent=0 // pred_check
    _
  $region15: #{_transformer_forward.3} parent=0 // pred_check_branch
    %20 = sbr.rel (0) target = $region17
  $region16: #{_transformer_forward.3} parent=0 // pred_region
    _
  $region17: #{_transformer_forward.3} parent=0 // pred_fallthru
    _
  // Predicated region
  $region18: #{_transformer_forward.3} parent=0 // pred_check
    _
  $region19: #{_transformer_forward.3} parent=0 // pred_check_branch
    %22 = sbr.rel (0) target = $region21
  $region20: #{_transformer_forward.3} parent=0 // pred_region
    _
  $region21: #{_transformer_forward.3} parent=0 // pred_fallthru
    _
  // Predicated region
  $region22: #{_transformer_forward.3} parent=0 // pred_check
    _
  $region23: #{_transformer_forward.3} parent=0 // pred_check_branch
    %24 = sbr.rel (0) target = $region25
  $region24: #{_transformer_forward.3} parent=0 // pred_region
    _
  $region25: #{_transformer_forward.3} parent=0 // pred_fallthru
    _
  %v26 = vld [vmem:[%s1] sm:$0xf]
  %v27 = vld [vmem:[%s0] sm:$0xff]
  %v28 = vld [vmem:[%s0 + $0x8] sm:$0xff]
  %v29 = vld [vmem:[%s0 + $0x10] sm:$0xff]
  %v30 = vld [vmem:[%s0 + $0x18] sm:$0xff]
  %v31 = vld [vmem:[%s0 + $0x20] sm:$0xff]
  %v32 = vld [vmem:[%s0 + $0x28] sm:$0xff]
  %v33 = vld [vmem:[%s0 + $0x30] sm:$0xff]
  %v34 = vld [vmem:[%s0 + $0x38] sm:$0xff]
  %v35 = vld [vmem:[%s0 + $0x40] sm:$0x33]
  %v36 = vld [vmem:[%s0 + $0x48] sm:$0x33]
  %v37 = vld [vmem:[%s2] sm:$0xff]
  %39 = vset.pattern.permute.xlu0 0
  %40 = vperm.xlu0 %39, %v37
  %v41 = vpop.permute.xlu0 %40
  %v53 = vunpack.c.l.b16 %v27
  %v54 = vunpack.c.h.b16 %v27
  %v55 = vunpack.c.l.b16 %v28
  %v56 = vunpack.c.h.b16 %v28
  %v57 = vunpack.c.l.b16 %v29
  %v58 = vunpack.c.h.b16 %v29
  %v59 = vunpack.c.l.b16 %v30
  %v60 = vunpack.c.h.b16 %v30
  %v61 = vunpack.c.l.b16 %v31
  %v62 = vunpack.c.h.b16 %v31
  %v63 = vunpack.c.l.b16 %v32
  %v64 = vunpack.c.h.b16 %v32
  %v65 = vunpack.c.l.b16 %v33
  %v66 = vunpack.c.h.b16 %v33
  %v67 = vunpack.c.l.b16 %v34
  %v68 = vunpack.c.h.b16 %v34
  %v69 = vunpack.c.l.b16 %v35
  %v70 = vunpack.c.h.b16 %v35
  %v71 = vunpack.c.l.b16 %v36
  %v72 = vunpack.c.h.b16 %v36
  %v73 = vpack.c.b16 %v57, %v53
  %v74 = vpack.c.b16 %v58, %v54
  %v75 = vpack.c.b16 %v59, %v55
  %v76 = vpack.c.b16 %v60, %v56
  %v77 = vpack.c.b16 %v65, %v61
  %v78 = vpack.c.b16 %v66, %v62
  %v79 = vpack.c.b16 %v67, %v63
  %v80 = vpack.c.b16 %v68, %v64
  %v81 = vpack.c.b16 %v69, %v69
  %v82 = vpack.c.b16 %v70, %v70
  %v83 = vpack.c.b16 %v71, %v71
  %v84 = vpack.c.b16 %v72, %v72
  %vm93 = vcmask 293888
  %v95 = vsel %vm93, %v26, 0
  %vm97 = vcmask 1041408
  %v99 = vsel %vm97, %v81, 0
  %v102 = vsel %vm97, %v82, 0
  %v105 = vsel %vm97, %v83, 0
  %v108 = vsel %vm97, %v84, 0
  %110 = vmatprep.subr.bf16.mxu0 %v74
  %111 = vmatpush1.bf16.msra.mxu0 %v73
  %112 = vmatprep.subr.bf16.mxu0 %v78
  %113 = vmatpush1.bf16.msra.mxu0 %v77
  %114 = vmatprep.subr.bf16.mxu0 %v102
  %115 = vmatpush1.bf16.msra.mxu0 %v99
  %116 = vmatprep.subr.bf16.mxu0 0
  %117 = vmatpush1.bf16.msra.mxu0 0
  %118 = vmatprep.subr.bf16.mxu0 0
  %119 = vmatpush1.bf16.msra.mxu0 0
  %120 = vmatprep.subr.bf16.mxu0 0
  %121 = vmatpush1.bf16.msra.mxu0 0
  %122 = vmatprep.subr.bf16.mxu0 0
  %123 = vmatpush1.bf16.msra.mxu0 0
  %124 = vmatprep.subr.bf16.mxu0 0
  %125 = vmatpush1.bf16.msra.mxu0 0
  %126 = vmatprep.subr.bf16.mxu0 0
  %127 = vmatpush1.bf16.msra.mxu0 0
  %128 = vmatprep.subr.bf16.mxu0 0
  %129 = vmatpush1.bf16.msra.mxu0 0
  %130 = vmatprep.subr.bf16.mxu0 0
  %131 = vmatpush1.bf16.msra.mxu0 0
  %132 = vmatprep.subr.bf16.mxu0 0
  %133 = vmatpush1.bf16.msra.mxu0 0
  %134 = vmatprep.subr.bf16.mxu0 0
  %135 = vmatpush1.bf16.msra.mxu0 0
  %136 = vmatprep.subr.bf16.mxu0 0
  %137 = vmatpush1.bf16.msra.mxu0 0
  %138 = vmatprep.subr.bf16.mxu0 0
  %139 = vmatpush1.bf16.msra.mxu0 0
  %140 = vmatprep.subr.bf16.mxu0 0
  %141 = vmatpush1.bf16.msra.mxu0 0
  %142 = vmatprep.mubr.bf16.mxu0 0
  %143 = vmatmul.mubr.bf16.gmra.mrb[0].mxu0 %v95
  %v144 = vpop.f32.mrb[0].mxu0
  %v145 = vadd.f32 %v41, %v144
  %v146 = vpop.f32.mrb[0].mxu0
  %v147 = vadd.f32 %v41, %v146
  %v148 = vpop.f32.mrb[0].mxu0
  %v149 = vpop.f32.mrb[0].mxu0
  %150 = vdwg.mxu0
  %151 = vmatprep.subr.bf16.mxu0 %v76
  %152 = vmatpush1.bf16.msra.mxu0 %v75
  %153 = vmatprep.subr.bf16.mxu0 %v80
  %154 = vmatpush1.bf16.msra.mxu0 %v79
  %155 = vmatprep.subr.bf16.mxu0 %v108
  %156 = vmatpush1.bf16.msra.mxu0 %v105
  %157 = vmatprep.subr.bf16.mxu0 0
  %158 = vmatpush1.bf16.msra.mxu0 0
  %159 = vmatprep.subr.bf16.mxu0 0
  %160 = vmatpush1.bf16.msra.mxu0 0
  %161 = vmatprep.subr.bf16.mxu0 0
  %162 = vmatpush1.bf16.msra.mxu0 0
  %163 = vmatprep.subr.bf16.mxu0 0
  %164 = vmatpush1.bf16.msra.mxu0 0
  %165 = vmatprep.subr.bf16.mxu0 0
  %166 = vmatpush1.bf16.msra.mxu0 0
  %167 = vmatprep.subr.bf16.mxu0 0
  %168 = vmatpush1.bf16.msra.mxu0 0
  %169 = vmatprep.subr.bf16.mxu0 0
  %170 = vmatpush1.bf16.msra.mxu0 0
  %171 = vmatprep.subr.bf16.mxu0 0
  %172 = vmatpush1.bf16.msra.mxu0 0
  %173 = vmatprep.subr.bf16.mxu0 0
  %174 = vmatpush1.bf16.msra.mxu0 0
  %175 = vmatprep.subr.bf16.mxu0 0
  %176 = vmatpush1.bf16.msra.mxu0 0
  %177 = vmatprep.subr.bf16.mxu0 0
  %178 = vmatpush1.bf16.msra.mxu0 0
  %179 = vmatprep.subr.bf16.mxu0 0
  %180 = vmatpush1.bf16.msra.mxu0 0
  %181 = vmatprep.subr.bf16.mxu0 0
  %182 = vmatpush1.bf16.msra.mxu0 0
  %183 = vmatprep.mubr.bf16.mxu0 0
  %184 = vmatmul.mubr.bf16.gmra.mrb[0].mxu0 %v95
  %v185 = vpop.f32.mrb[0].mxu0
  %v186 = vadd.f32 %v41, %v185
  %v187 = vpop.f32.mrb[0].mxu0
  %v188 = vadd.f32 %v41, %v187
  %v189 = vpop.f32.mrb[0].mxu0
  %v190 = vpop.f32.mrb[0].mxu0
  %191 = vdwg.mxu0
  %v192 = vmax.f32 %v145, 0.0
  %v193 = vmax.f32 %v147, 0.0
  %v194 = vmax.f32 %v186, 0.0
  %v195 = vmax.f32 %v188, 0.0
  %v196 = vld [vmem:[%s3] sm:$0x3]
  %v197 = vld [vmem:[%s4] sm:$0x3]
  %199 = vset.pattern.permute.xlu0 0
  %200 = vperm.xlu0 %199, %v197
  %v201 = vpop.permute.xlu0 %200
  %vm203 = vcmask 64512
  %v205 = vsel %vm203, %v196, 0
  %207 = vmatprep.subr.mxu0 %v193
  %208 = vmatpush1.msra.mxu0 %v192
  %209 = vmatprep.subr.mxu0 0.0
  %210 = vmatpush1.msra.mxu0 0.0
  %211 = vmatprep.subr.mxu0 0.0
  %212 = vmatpush1.msra.mxu0 0.0
  %213 = vmatprep.subr.mxu0 0.0
  %214 = vmatpush1.msra.mxu0 0.0
  %215 = vmatprep.subr.mxu0 0.0
  %216 = vmatpush1.msra.mxu0 0.0
  %217 = vmatprep.subr.mxu0 0.0
  %218 = vmatpush1.msra.mxu0 0.0
  %219 = vmatprep.subr.mxu0 0.0
  %220 = vmatpush1.msra.mxu0 0.0
  %221 = vmatprep.subr.mxu0 0.0
  %222 = vmatpush1.msra.mxu0 0.0
  %223 = vmatprep.subr.mxu0 0.0
  %224 = vmatpush1.msra.mxu0 0.0
  %225 = vmatprep.subr.mxu0 0.0
  %226 = vmatpush1.msra.mxu0 0.0
  %227 = vmatprep.subr.mxu0 0.0
  %228 = vmatpush1.msra.mxu0 0.0
  %229 = vmatprep.subr.mxu0 0.0
  %230 = vmatpush1.msra.mxu0 0.0
  %231 = vmatprep.subr.mxu0 0.0
  %232 = vmatpush1.msra.mxu0 0.0
  %233 = vmatprep.subr.mxu0 0.0
  %234 = vmatpush1.msra.mxu0 0.0
  %235 = vmatprep.subr.mxu0 0.0
  %236 = vmatpush1.msra.mxu0 0.0
  %237 = vmatprep.subr.mxu0 0.0
  %238 = vmatpush1.msra.mxu0 0.0
  %239 = vmatprep.subr.mxu0 0.0
  %240 = vmatpush1.msra.mxu0 0.0
  %241 = vmatprep.subr.mxu0 0.0
  %242 = vmatpush1.msra.mxu0 0.0
  %243 = vmatprep.subr.mxu0 0.0
  %244 = vmatpush1.msra.mxu0 0.0
  %245 = vmatprep.subr.mxu0 0.0
  %246 = vmatpush1.msra.mxu0 0.0
  %247 = vmatprep.subr.mxu0 0.0
  %248 = vmatpush1.msra.mxu0 0.0
  %249 = vmatprep.subr.mxu0 0.0
  %250 = vmatpush1.msra.mxu0 0.0
  %251 = vmatprep.subr.mxu0 0.0
  %252 = vmatpush1.msra.mxu0 0.0
  %253 = vmatprep.subr.mxu0 0.0
  %254 = vmatpush1.msra.mxu0 0.0
  %255 = vmatprep.subr.mxu0 0.0
  %256 = vmatpush1.msra.mxu0 0.0
  %257 = vmatprep.subr.mxu0 0.0
  %258 = vmatpush1.msra.mxu0 0.0
  %259 = vmatprep.subr.mxu0 0.0
  %260 = vmatpush1.msra.mxu0 0.0
  %261 = vmatprep.subr.mxu0 0.0
  %262 = vmatpush1.msra.mxu0 0.0
  %263 = vmatprep.subr.mxu0 0.0
  %264 = vmatpush1.msra.mxu0 0.0
  %265 = vmatprep.subr.mxu0 0.0
  %266 = vmatpush1.msra.mxu0 0.0
  %267 = vmatprep.subr.mxu0 0.0
  %268 = vmatpush1.msra.mxu0 0.0
  %269 = vmatprep.subr.mxu0 0.0
  %270 = vmatpush1.msra.mxu0 0.0
  %271 = vmatprep.mubr.f32.mxu0 0.0
  %272 = vmatmul.mubr.f32.gmra.mrb[0].mxu0 %v205
  %v273 = vpop.f32.mrb[0].mxu0
  %v274 = vadd.f32 %v201, %v273
  %v275 = vpop.f32.mrb[0].mxu0
  %v276 = vadd.f32 %v201, %v275
  %277 = vdwg.mxu0
  %278 = vmatprep.subr.mxu0 %v195
  %279 = vmatpush1.msra.mxu0 %v194
  %280 = vmatprep.subr.mxu0 0.0
  %281 = vmatpush1.msra.mxu0 0.0
  %282 = vmatprep.subr.mxu0 0.0
  %283 = vmatpush1.msra.mxu0 0.0
  %284 = vmatprep.subr.mxu0 0.0
  %285 = vmatpush1.msra.mxu0 0.0
  %286 = vmatprep.subr.mxu0 0.0
  %287 = vmatpush1.msra.mxu0 0.0
  %288 = vmatprep.subr.mxu0 0.0
  %289 = vmatpush1.msra.mxu0 0.0
  %290 = vmatprep.subr.mxu0 0.0
  %291 = vmatpush1.msra.mxu0 0.0
  %292 = vmatprep.subr.mxu0 0.0
  %293 = vmatpush1.msra.mxu0 0.0
  %294 = vmatprep.subr.mxu0 0.0
  %295 = vmatpush1.msra.mxu0 0.0
  %296 = vmatprep.subr.mxu0 0.0
  %297 = vmatpush1.msra.mxu0 0.0
  %298 = vmatprep.subr.mxu0 0.0
  %299 = vmatpush1.msra.mxu0 0.0
  %300 = vmatprep.subr.mxu0 0.0
  %301 = vmatpush1.msra.mxu0 0.0
  %302 = vmatprep.subr.mxu0 0.0
  %303 = vmatpush1.msra.mxu0 0.0
  %304 = vmatprep.subr.mxu0 0.0
  %305 = vmatpush1.msra.mxu0 0.0
  %306 = vmatprep.subr.mxu0 0.0
  %307 = vmatpush1.msra.mxu0 0.0
  %308 = vmatprep.subr.mxu0 0.0
  %309 = vmatpush1.msra.mxu0 0.0
  %310 = vmatprep.subr.mxu0 0.0
  %311 = vmatpush1.msra.mxu0 0.0
  %312 = vmatprep.subr.mxu0 0.0
  %313 = vmatpush1.msra.mxu0 0.0
  %314 = vmatprep.subr.mxu0 0.0
  %315 = vmatpush1.msra.mxu0 0.0
  %316 = vmatprep.subr.mxu0 0.0
  %317 = vmatpush1.msra.mxu0 0.0
  %318 = vmatprep.subr.mxu0 0.0
  %319 = vmatpush1.msra.mxu0 0.0
  %320 = vmatprep.subr.mxu0 0.0
  %321 = vmatpush1.msra.mxu0 0.0
  %322 = vmatprep.subr.mxu0 0.0
  %323 = vmatpush1.msra.mxu0 0.0
  %324 = vmatprep.subr.mxu0 0.0
  %325 = vmatpush1.msra.mxu0 0.0
  %326 = vmatprep.subr.mxu0 0.0
  %327 = vmatpush1.msra.mxu0 0.0
  %328 = vmatprep.subr.mxu0 0.0
  %329 = vmatpush1.msra.mxu0 0.0
  %330 = vmatprep.subr.mxu0 0.0
  %331 = vmatpush1.msra.mxu0 0.0
  %332 = vmatprep.subr.mxu0 0.0
  %333 = vmatpush1.msra.mxu0 0.0
  %334 = vmatprep.subr.mxu0 0.0
  %335 = vmatpush1.msra.mxu0 0.0
  %336 = vmatprep.subr.mxu0 0.0
  %337 = vmatpush1.msra.mxu0 0.0
  %338 = vmatprep.subr.mxu0 0.0
  %339 = vmatpush1.msra.mxu0 0.0
  %340 = vmatprep.subr.mxu0 0.0
  %341 = vmatpush1.msra.mxu0 0.0
  %342 = vmatprep.mubr.f32.mxu0 0.0
  %343 = vmatmul.mubr.f32.gmra.mrb[0].mxu0 %v205
  %v344 = vpop.f32.mrb[0].mxu0
  %v345 = vadd.f32 %v201, %v344
  %v346 = vpop.f32.mrb[0].mxu0
  %v347 = vadd.f32 %v201, %v346
  %348 = vdwg.mxu0
  %v349 = vld [vmem:[%s5] sm:$0xf]
  %v350 = vsel %vm97, %v274, -inf
  %v351 = vsel %vm97, %v276, -inf
  %v352 = vmax.f32 %v350, %v351
  %353 = vmax.xlane.f32.xlu0 %v352
  %v354 = vpop.xlane.xlu0 %353
  %v355 = vsub.f32 %v274, %v354
  %v356 = vsub.f32 %v276, %v354
  %v357 = vmul.f32 %v355, 1.442695
  %v358 = vpow.pop %v357
  %v359 = vmul.f32 %v356, 1.442695
  %v360 = vpow.pop %v359
  %v361 = vsel %vm97, %v358, 0.0
  %v362 = vsel %vm97, %v360, 0.0
  %v363 = vadd.f32 %v361, %v362
  %364 = vadd.xlane.f32.xlu0 %v363
  %v365 = vpop.xlane.xlu0 %364
  %v366 = vrcp.pop %v365
  %v367 = vmul.f32 %v358, %v366
  %v368 = vmul.f32 %v360, %v366
  %v371 = vcombine.low %v367, %v368
  %v373 = vunpack.c.l.s4 1983009808
  %v374 = vunpack.c.0.s8 %v373
  %v375 = vlaneseq
  %v376 = vshrl.u32 %v375, 7
  %v377 = vsub.s32 %v374, %v376
  %v378 = vrot.slane %v371, %v377
  %380 = vst [vmem:[%s6] sm:$0xf] %v378
  %v383 = vunpack.c.l.s4 1983009808
  %v384 = vunpack.c.0.s8 %v383
  %v385 = vlaneseq
  %v386 = vshrl.u32 %v385, 7
  %v387 = vsub.s32 %v384, %v386
  %v388 = vrot.slane %v349, %v387
  %v389 = vcombine.high %v388, %v388
  %v392 = vmul.f32 %v367, %v388
  %v393 = vmul.f32 %v368, %v389
  %v394 = vsel %vm97, %v392, 0.0
  %v395 = vsel %vm97, %v393, 0.0
  %v396 = vadd.f32 %v394, %v395
  %397 = vadd.xlane.f32.xlu0 %v396
  %v398 = vpop.xlane.xlu0 %397
  %399 = vst [vmem:[%s7] sm:$0x3] %v398
  %v400 = vsel %vm97, %v345, -inf
  %v401 = vsel %vm97, %v347, -inf
  %v402 = vmax.f32 %v400, %v401
  %403 = vmax.xlane.f32.xlu0 %v402
  %v404 = vpop.xlane.xlu0 %403
  %v405 = vsub.f32 %v345, %v404
  %v406 = vsub.f32 %v347, %v404
  %v407 = vmul.f32 %v405, 1.442695
  %v408 = vpow.pop %v407
  %v409 = vmul.f32 %v406, 1.442695
  %v410 = vpow.pop %v409
  %v411 = vsel %vm97, %v408, 0.0
  %v412 = vsel %vm97, %v410, 0.0
  %v413 = vadd.f32 %v411, %v412
  %414 = vadd.xlane.f32.xlu0 %v413
  %v415 = vpop.xlane.xlu0 %414
  %v416 = vrcp.pop %v415
  %v417 = vmul.f32 %v408, %v416
  %v418 = vmul.f32 %v410, %v416
  %v421 = vcombine.low %v417, %v418
  %v423 = vunpack.c.l.s4 1983009808
  %v424 = vunpack.c.0.s8 %v423
  %v425 = vlaneseq
  %v426 = vshrl.u32 %v425, 7
  %v427 = vsub.s32 %v424, %v426
  %v428 = vrot.slane %v421, %v427
  %430 = vst [vmem:[%s6 + $0x4] sm:$0xf] %v428
  %v431 = vmul.f32 %v417, %v388
  %v432 = vmul.f32 %v418, %v389
  %v433 = vsel %vm97, %v431, 0.0
  %v434 = vsel %vm97, %v432, 0.0
  %v435 = vadd.f32 %v433, %v434
  %436 = vadd.xlane.f32.xlu0 %v435
  %v437 = vpop.xlane.xlu0 %436
  %438 = vst [vmem:[%s7 + $0x2] sm:$0x3] %v437
  // Predicated region
  $region26: #{_transformer_forward.3} parent=0 // pred_check
    _
  $region27: #{_transformer_forward.3} parent=0 // pred_check_branch
    %440 = sbr.rel (0) target = $region29
  $region28: #{_transformer_forward.3} parent=0 // pred_region
    _
  $region29: #{_transformer_forward.3} parent=0 // pred_fallthru
    _
  // Predicated region
  $region30: #{_transformer_forward.3} parent=0 // pred_check
    _
  $region31: #{_transformer_forward.3} parent=0 // pred_check_branch
    %442 = sbr.rel (0) target = $region33
  $region32: #{_transformer_forward.3} parent=0 // pred_region
    _
  $region33: #{_transformer_forward.3} parent=0 // pred_fallthru
    _
  // Predicated region
  $region34: #{_transformer_forward.3} parent=0 // pred_check
    _
  $region35: #{_transformer_forward.3} parent=0 // pred_check_branch
    %444 = sbr.rel (0) target = $region37
  $region36: #{_transformer_forward.3} parent=0 // pred_region
    _
  $region37: #{_transformer_forward.3} parent=0 // pred_fallthru
    _
  // Predicated region
  $region38: #{_transformer_forward.3} parent=0 // pred_check
    _
  $region39: #{_transformer_forward.3} parent=0 // pred_check_branch
    %446 = sbr.rel (0) target = $region41
  $region40: #{_transformer_forward.3} parent=0 // pred_region
    _
  $region41: #{_transformer_forward.3} parent=0 // pred_fallthru
    _

</llo_original>
